<compile_context>
chip_gen: v5e
topology: v5e:2x2
jax: 0.10.0
libtpu: 0.0.40
codegen_flags: <defaults>
</compile_context>

<pallas_src>
import math
import jax
import jax.numpy as jnp
from jax.experimental import pallas as pl
from jax.experimental.pallas import tpu as pltpu

EMBED = 32                    # embed_dim
HEADS = 4                     # num_heads
HEAD_DIM = EMBED // HEADS     # 8
D_HID = 64                    # d_hid
SEQ = 8                       # sequence length
BATCH = 2                     # batch size
NS = BATCH * SEQ              # 16 rows of x / enc
BHS = HEADS * BATCH * SEQ     # 64 flat (head, batch, seq) rows

# ---- packed-parameter slab layout (f32, (392, 128)); all row offsets 8-aligned ----
SLAB_COLS = 128
R_QKV1 = 0      # (32,128) attn1 [q*scale | k | v | 0] block-diagonal weights (full-lane RHS)
R_KV2 = 32      # (32,128) attn2 [k | v | 0 | 0] block-diagonal weights       (full-lane RHS)
R_Q2 = 64       # (32,128) attn2 [q*scale | 0 | 0 | 0] block-diagonal weights (full-lane RHS)
R_WO1 = 96      # (32, 32) attn1 fc_out weight, pre-transposed (lane-0 slice)
R_WO2 = 128     # (32, 32) attn2 fc_out weight, pre-transposed
R_W1 = 160      # (32, 64) fc1 weight, pre-transposed
R_W2 = 192      # (64, 32) fc2 weight, pre-transposed
R_BVEC = 256    # rows 0..3: fc_out1 / fc_out2 / fc1 / fc2 biases packed into one 8-row block
R_AB1 = 264     # (64,128) attn1 additive bias: block-diag + causal, pad keys masked
R_AB2 = 328     # (64,128) attn2 additive bias: block-diag only, pad keys masked
SLAB_ROWS = 392


def decoder_layer_kernel(xe_ref, slab_ref, o_ref):
    x = xe_ref[0:NS, :]           # (16, 32) decoder input
    enc = xe_ref[NS:2 * NS, :]    # (16, 32) encoder output

    # static slices of the packed weight slab (already resident in VMEM)
    w_qkv1 = slab_ref[R_QKV1:R_QKV1 + EMBED, :]          # (32,128) full-lane
    w_kv2 = slab_ref[R_KV2:R_KV2 + EMBED, :]             # (32,128) full-lane
    w_q2 = slab_ref[R_Q2:R_Q2 + EMBED, :]                # (32,128) full-lane
    wo1_t = slab_ref[R_WO1:R_WO1 + EMBED, 0:EMBED]       # (32,32)
    wo2_t = slab_ref[R_WO2:R_WO2 + EMBED, 0:EMBED]       # (32,32)
    w1_t = slab_ref[R_W1:R_W1 + EMBED, 0:D_HID]          # (32,64)
    w2_t = slab_ref[R_W2:R_W2 + D_HID, 0:EMBED]          # (64,32)
    bo1 = slab_ref[R_BVEC + 0:R_BVEC + 1, 0:EMBED]       # (1,32)
    bo2 = slab_ref[R_BVEC + 1:R_BVEC + 2, 0:EMBED]       # (1,32)
    b1 = slab_ref[R_BVEC + 2:R_BVEC + 3, 0:D_HID]        # (1,64)
    b2 = slab_ref[R_BVEC + 3:R_BVEC + 4, 0:EMBED]        # (1,32)
    bias1 = slab_ref[R_AB1:R_AB1 + BHS, :]               # (64,128)
    bias2 = slab_ref[R_AB2:R_AB2 + BHS, :]               # (64,128)

    def split_groups(t_full):
        # (B*S, 128) -> (4, H*B*S, D): ONE relayout per projected tensor group.
        # Column layout of t_full is [g0 | g1 | g2 | g3], each (H, D) head-blocked.
        return (t_full.reshape(BATCH * SEQ, 4 * HEADS, HEAD_DIM)
                .transpose(1, 0, 2)
                .reshape(4, BHS, HEAD_DIM))

    def merge_heads(t):
        # (H*B*S, D) -> (B*S, E): single merge per attention.
        return (t.reshape(HEADS, BATCH, SEQ, HEAD_DIM)
                .transpose(1, 2, 0, 3)
                .reshape(BATCH * SEQ, EMBED))

    def attention(q, k_ext, v_ext, bias, wo_t, bo):
        # q: (64,8) already carries 1/sqrt(E); k_ext/v_ext: (128,8) key/value rows with the
        # extra 64 rows neutralized by `bias` (exp underflows to exactly 0) / zero values.
        energy = jnp.einsum('qd,kd->qk', q, k_ext,
                            preferred_element_type=jnp.float32)      # one (64x8x128) matmul
        energy = energy + bias                                        # block-diag + causal + pad mask
        m = jnp.max(energy, axis=-1, keepdims=True)
        p = jnp.exp(energy - m)
        denom = jnp.sum(p, axis=-1, keepdims=True)
        # approx reciprocal (EUP slot): rel. err ~2^-12, well inside the 5e-3 tolerance.
        att = p * pl.reciprocal(denom, approx=True)
        ctx = jnp.dot(att, v_ext, preferred_element_type=jnp.float32)  # one (64x128x8) matmul
        ctx = merge_heads(ctx)
        return jnp.dot(ctx, wo_t, preferred_element_type=jnp.float32) + bo

    # ---- masked self-attention + residual ----
    g1 = split_groups(jnp.dot(x, w_qkv1, preferred_element_type=jnp.float32))  # [Qs, K, V, 0]
    k1_ext = g1[1:3].reshape(2 * BHS, HEAD_DIM)   # [K ; V]  (V half masked by bias1 pad cols)
    v1_ext = g1[2:4].reshape(2 * BHS, HEAD_DIM)   # [V ; 0]
    x1 = attention(g1[0], k1_ext, v1_ext, bias1, wo1_t, bo1) + x

    # ---- cross-attention (K/V from encoder output, no causal mask) + residual ----
    g2 = split_groups(jnp.dot(enc, w_kv2, preferred_element_type=jnp.float32))  # [K2, V2, 0, 0]
    gq = split_groups(jnp.dot(x1, w_q2, preferred_element_type=jnp.float32))    # [Q2s, 0, 0, 0]
    k2_ext = g2[0:2].reshape(2 * BHS, HEAD_DIM)   # [K2 ; V2] (V2 half masked by bias2 pad cols)
    v2_ext = g2[1:3].reshape(2 * BHS, HEAD_DIM)   # [V2 ; 0]
    x2 = attention(gq[0], k2_ext, v2_ext, bias2, wo2_t, bo2) + x1

    # ---- feed forward + residual ----
    h = jnp.maximum(jnp.dot(x2, w1_t, preferred_element_type=jnp.float32) + b1, 0.0)
    out = jnp.dot(h, w2_t, preferred_element_type=jnp.float32) + b2 + x2

    o_ref[0:NS, :] = out.astype(o_ref.dtype)
    o_ref[NS:2 * NS, :] = enc.astype(o_ref.dtype)  # keep the aliased/donated buffer fully defined


def pack_slab(params, mask):
    """One-time host-side weight prep (call OUTSIDE the hot loop): block-diagonal fused QKV,
    pre-transposed weights, folded 1/sqrt(E) scale, and the (64,128) block-diagonal additive
    attention biases (causal mask folded into attn1's), all packed into one (392,128) f32 slab."""
    (wv1, wk1, wq1, wfo1, bfo1,
     wv2, wk2, wq2, wfo2, bfo2,
     w1, b1, w2, b2) = params
    eye = jnp.eye(HEADS, dtype=jnp.float32)
    scale = jnp.float32(1.0 / math.sqrt(EMBED))

    def bd(w):  # per-head Linear (no bias) as a block-diagonal (E, E) right-matmul
        return jnp.kron(eye, w.T.astype(jnp.float32))

    w_qkv1 = jnp.concatenate([bd(wq1) * scale, bd(wk1), bd(wv1)], axis=1)   # (32, 96)
    w_kv2 = jnp.concatenate([bd(wk2), bd(wv2)], axis=1)                     # (32, 64)
    w_q2 = bd(wq2) * scale                                                  # (32, 32)

    # additive attention biases over the flat (head, batch, seq) row layout
    # (masked_fill(-1e20) happens before the /sqrt(E) in the reference -> divide the bias too)
    neg = jnp.float32(-1e20) * scale
    blk = jnp.arange(BHS, dtype=jnp.int32) // SEQ          # (h*B + b) block id per flat row
    pos = jnp.arange(BHS, dtype=jnp.int32) % SEQ           # seq position per flat row
    same_blk = blk[:, None] == blk[None, :]                # (64,64)
    keep = mask[pos[:, None], pos[None, :]] != 0           # causal keep pattern, tiled
    pad = jnp.full((BHS, SLAB_COLS - BHS), neg, jnp.float32)   # masks the padded key half
    bias1 = jnp.concatenate([jnp.where(same_blk & keep, 0.0, neg), pad], axis=1)
    bias2 = jnp.concatenate([jnp.where(same_blk, 0.0, neg), pad], axis=1)

    slab = jnp.zeros((SLAB_ROWS, SLAB_COLS), jnp.float32)
    slab = slab.at[R_QKV1:R_QKV1 + EMBED, 0:3 * EMBED].set(w_qkv1)
    slab = slab.at[R_KV2:R_KV2 + EMBED, 0:2 * EMBED].set(w_kv2)
    slab = slab.at[R_Q2:R_Q2 + EMBED, 0:EMBED].set(w_q2)
    slab = slab.at[R_WO1:R_WO1 + EMBED, 0:EMBED].set(wfo1.T.astype(jnp.float32))
    slab = slab.at[R_WO2:R_WO2 + EMBED, 0:EMBED].set(wfo2.T.astype(jnp.float32))
    slab = slab.at[R_W1:R_W1 + EMBED, 0:D_HID].set(w1.T.astype(jnp.float32))
    slab = slab.at[R_W2:R_W2 + D_HID, 0:EMBED].set(w2.T.astype(jnp.float32))
    slab = slab.at[R_BVEC + 0, 0:EMBED].set(bfo1[0].astype(jnp.float32))
    slab = slab.at[R_BVEC + 1, 0:EMBED].set(bfo2[0].astype(jnp.float32))
    slab = slab.at[R_BVEC + 2, 0:D_HID].set(b1[0].astype(jnp.float32))
    slab = slab.at[R_BVEC + 3, 0:EMBED].set(b2[0].astype(jnp.float32))
    slab = slab.at[R_AB1:R_AB1 + BHS, :].set(bias1)
    slab = slab.at[R_AB2:R_AB2 + BHS, :].set(bias2)
    return slab


def _decoder_layer_impl(x, enc_out, slab):
    N, S, E = x.shape
    # single concatenated (2*N*S, E) activation input -> one DMA; output aliases it.
    xe = jnp.concatenate([x.reshape(N * S, E), enc_out.reshape(N * S, E)], axis=0)
    res = pl.pallas_call(
        decoder_layer_kernel,
        out_shape=jax.ShapeDtypeStruct((2 * N * S, E), x.dtype),
        in_specs=[pl.BlockSpec(memory_space=pltpu.MemorySpace.VMEM),
                  pl.BlockSpec(memory_space=pltpu.MemorySpace.VMEM)],
        out_specs=pl.BlockSpec(memory_space=pltpu.MemorySpace.VMEM),
        input_output_aliases={0: 0},
    )(xe, slab)
    return res[:N * S].reshape(N, S, E)


# jitted call path: takes the PRE-PACKED slab so per-call weight prep cost is zero.
decoder_layer = jax.jit(_decoder_layer_impl)


# ------------------------- pure-JAX reference (mirrors the torch code) -------------------------
def _ref_attention(values, keys, query, mask, wv, wk, wq, wfo, bfo):
    lk, lq = values.shape[0], query.shape[0]
    v = values.reshape(lk, HEADS, HEAD_DIM)
    k = keys.reshape(lk, HEADS, HEAD_DIM)
    q = query.reshape(lq, HEADS, HEAD_DIM)
    v = jnp.einsum('lhd,od->lho', v, wv)
    k = jnp.einsum('lhd,od->lho', k, wk)
    q = jnp.einsum('lhd,od->lho', q, wq)
    energy = jnp.einsum('qhd,khd->hqk', q, k)
    if mask is not None:
        energy = jnp.where(mask[None, :, :] == 0, jnp.float32(-1e20), energy)
    att = jax.nn.softmax(energy / jnp.float32(math.sqrt(EMBED)), axis=-1)
    out = jnp.einsum('hql,lhd->qhd', att, v).reshape(lq, EMBED)
    return out @ wfo.T + bfo[0]


def decoder_layer_reference(x, enc_out, mask, params):
    (wv1, wk1, wq1, wfo1, bfo1,
     wv2, wk2, wq2, wfo2, bfo2,
     w1, b1, w2, b2) = params

    def one(xb, eb):
        a1 = _ref_attention(xb, xb, xb, mask, wv1, wk1, wq1, wfo1, bfo1) + xb
        a2 = _ref_attention(eb, eb, a1, None, wv2, wk2, wq2, wfo2, bfo2) + a1
        h = jnp.maximum(a2 @ w1.T + b1[0], 0.0)
        return h @ w2.T + b2[0] + a2

    return jax.vmap(one)(x, enc_out)


def make_params(key):
    ks = jax.random.split(key, 14)
    s = 0.1
    wv1 = s * jax.random.normal(ks[0], (HEAD_DIM, HEAD_DIM), jnp.float32)
    wk1 = s * jax.random.normal(ks[1], (HEAD_DIM, HEAD_DIM), jnp.float32)
    wq1 = s * jax.random.normal(ks[2], (HEAD_DIM, HEAD_DIM), jnp.float32)
    wfo1 = s * jax.random.normal(ks[3], (EMBED, EMBED), jnp.float32)
    bfo1 = s * jax.random.normal(ks[4], (1, EMBED), jnp.float32)
    wv2 = s * jax.random.normal(ks[5], (HEAD_DIM, HEAD_DIM), jnp.float32)
    wk2 = s * jax.random.normal(ks[6], (HEAD_DIM, HEAD_DIM), jnp.float32)
    wq2 = s * jax.random.normal(ks[7], (HEAD_DIM, HEAD_DIM), jnp.float32)
    wfo2 = s * jax.random.normal(ks[8], (EMBED, EMBED), jnp.float32)
    bfo2 = s * jax.random.normal(ks[9], (1, EMBED), jnp.float32)
    w1 = s * jax.random.normal(ks[10], (D_HID, EMBED), jnp.float32)
    b1 = s * jax.random.normal(ks[11], (1, D_HID), jnp.float32)
    w2 = s * jax.random.normal(ks[12], (EMBED, D_HID), jnp.float32)
    b2 = s * jax.random.normal(ks[13], (1, EMBED), jnp.float32)
    return [wv1, wk1, wq1, wfo1, bfo1,
            wv2, wk2, wq2, wfo2, bfo2,
            w1, b1, w2, b2]


if __name__ == "__main__":
    key = jax.random.PRNGKey(0)
    kx, ke, kp = jax.random.split(key, 3)

    x = jax.random.normal(kx, (BATCH, SEQ, EMBED), jnp.float32)
    enc_out = jax.random.normal(ke, (BATCH, SEQ, EMBED), jnp.float32)
    # causal mask: 1 = keep, 0 = masked out
    mask = jnp.tril(jnp.ones((SEQ, SEQ), jnp.float32))
    params = make_params(kp)

    # one-time weight prep, hoisted out of the call path (perf feedback #1)
    slab = jax.block_until_ready(pack_slab(params, mask))

    out = decoder_layer(x, enc_out, slab)
    out = jax.block_until_ready(out)

    ref = decoder_layer_reference(x, enc_out, mask, params)
    assert out.shape == (BATCH, SEQ, EMBED)
    err = float(jnp.max(jnp.abs(out - ref)))
    assert err < 5e-3, f"max abs err {err}"
    print("KERNEL_OK")
</pallas_src>

<mosaic_0001>
module attributes {stable_mosaic.version = 11 : i64} {
  func.func @decoder_layer_kernel(%arg0: memref<32x32xf32, #tpu.memory_space<vmem>>, %arg1: memref<392x128xf32, #tpu.memory_space<vmem>>, %arg2: memref<32x32xf32, #tpu.memory_space<vmem>>) attributes {dimension_semantics = [], scalar_prefetch = 0 : i64, scratch_operands = 0 : i64, tpu.core_type = #tpu.core_type<tc>} {
    %c0 = arith.constant 0 : index
    %c0_0 = arith.constant 0 : index
    %0 = vector.load %arg0[%c0, %c0_0] : memref<32x32xf32, #tpu.memory_space<vmem>>, vector<16x32xf32>
    %c16 = arith.constant 16 : index
    %c0_1 = arith.constant 0 : index
    %1 = vector.load %arg0[%c16, %c0_1] : memref<32x32xf32, #tpu.memory_space<vmem>>, vector<16x32xf32>
    %c0_2 = arith.constant 0 : index
    %c0_3 = arith.constant 0 : index
    %2 = vector.load %arg1[%c0_2, %c0_3] : memref<392x128xf32, #tpu.memory_space<vmem>>, vector<32x128xf32>
    %c32 = arith.constant 32 : index
    %c0_4 = arith.constant 0 : index
    %3 = vector.load %arg1[%c32, %c0_4] : memref<392x128xf32, #tpu.memory_space<vmem>>, vector<32x128xf32>
    %c64 = arith.constant 64 : index
    %c0_5 = arith.constant 0 : index
    %4 = vector.load %arg1[%c64, %c0_5] : memref<392x128xf32, #tpu.memory_space<vmem>>, vector<32x128xf32>
    %c96 = arith.constant 96 : index
    %c0_6 = arith.constant 0 : index
    %5 = vector.load %arg1[%c96, %c0_6] : memref<392x128xf32, #tpu.memory_space<vmem>>, vector<32x32xf32>
    %c128 = arith.constant 128 : index
    %c0_7 = arith.constant 0 : index
    %6 = vector.load %arg1[%c128, %c0_7] : memref<392x128xf32, #tpu.memory_space<vmem>>, vector<32x32xf32>
    %c160 = arith.constant 160 : index
    %c0_8 = arith.constant 0 : index
    %7 = vector.load %arg1[%c160, %c0_8] : memref<392x128xf32, #tpu.memory_space<vmem>>, vector<32x64xf32>
    %c192 = arith.constant 192 : index
    %c0_9 = arith.constant 0 : index
    %8 = vector.load %arg1[%c192, %c0_9] : memref<392x128xf32, #tpu.memory_space<vmem>>, vector<64x32xf32>
    %c256 = arith.constant 256 : index
    %c0_10 = arith.constant 0 : index
    %9 = vector.load %arg1[%c256, %c0_10] : memref<392x128xf32, #tpu.memory_space<vmem>>, vector<1x32xf32>
    %c257 = arith.constant 257 : index
    %c0_11 = arith.constant 0 : index
    %10 = vector.load %arg1[%c257, %c0_11] : memref<392x128xf32, #tpu.memory_space<vmem>>, vector<1x32xf32>
    %c258 = arith.constant 258 : index
    %c0_12 = arith.constant 0 : index
    %11 = vector.load %arg1[%c258, %c0_12] : memref<392x128xf32, #tpu.memory_space<vmem>>, vector<1x64xf32>
    %c259 = arith.constant 259 : index
    %c0_13 = arith.constant 0 : index
    %12 = vector.load %arg1[%c259, %c0_13] : memref<392x128xf32, #tpu.memory_space<vmem>>, vector<1x32xf32>
    %c264 = arith.constant 264 : index
    %c0_14 = arith.constant 0 : index
    %13 = vector.load %arg1[%c264, %c0_14] : memref<392x128xf32, #tpu.memory_space<vmem>>, vector<64x128xf32>
    %c328 = arith.constant 328 : index
    %c0_15 = arith.constant 0 : index
    %14 = vector.load %arg1[%c328, %c0_15] : memref<392x128xf32, #tpu.memory_space<vmem>>, vector<64x128xf32>
    %cst = arith.constant dense<0.000000e+00> : vector<16x128xf32>
    %15 = tpu.matmul %0, %2, %cst {dimension_numbers = #tpu.dot_dimension_numbers<[1], [0], [0], [1], [0, 0, 1, 1], [], []>} : vector<16x32xf32>, vector<32x128xf32>, vector<16x128xf32> -> vector<16x128xf32>
    %16 = vector.shape_cast %15 : vector<16x128xf32> to vector<16x16x8xf32>
    %17 = tpu.transpose %16, [1, 0, 2] : vector<16x16x8xf32> -> vector<16x16x8xf32>
    %18 = vector.shape_cast %17 : vector<16x16x8xf32> to vector<4x64x8xf32>
    %19 = vector.extract_strided_slice %18 {offsets = [1, 0, 0], sizes = [2, 64, 8], strides = [1, 1, 1]} : vector<4x64x8xf32> to vector<2x64x8xf32>
    %20 = vector.shape_cast %19 : vector<2x64x8xf32> to vector<128x8xf32>
    %21 = vector.extract_strided_slice %18 {offsets = [2, 0, 0], sizes = [2, 64, 8], strides = [1, 1, 1]} : vector<4x64x8xf32> to vector<2x64x8xf32>
    %22 = vector.shape_cast %21 : vector<2x64x8xf32> to vector<128x8xf32>
    %23 = vector.extract_strided_slice %18 {offsets = [0, 0, 0], sizes = [1, 64, 8], strides = [1, 1, 1]} : vector<4x64x8xf32> to vector<1x64x8xf32>
    %24 = vector.shape_cast %23 : vector<1x64x8xf32> to vector<64x8xf32>
    "tpu.trace_start"() <{level = 10 : i32, message = "qd,kd->qk"}> : () -> ()
    %cst_16 = arith.constant dense<0.000000e+00> : vector<64x128xf32>
    %25 = tpu.matmul %24, %20, %cst_16 {dimension_numbers = #tpu.dot_dimension_numbers<[1], [1], [0], [0], [0, 0, 1, 0], [], []>} : vector<64x8xf32>, vector<128x8xf32>, vector<64x128xf32> -> vector<64x128xf32>
    "tpu.trace_stop"() : () -> ()
    %26 = arith.addf %25, %13 : vector<64x128xf32>
    %cst_17 = arith.constant dense<0xFF800000> : vector<64xf32>
    %27 = vector.multi_reduction <maximumf>, %26, %cst_17 [1] : vector<64x128xf32> to vector<64xf32>
    %28 = vector.shape_cast %27 : vector<64xf32> to vector<64x1xf32>
    %29 = vector.broadcast %28 : vector<64x1xf32> to vector<64x128xf32>
    %30 = arith.subf %26, %29 : vector<64x128xf32>
    %31 = math.exp %30 : vector<64x128xf32>
    %cst_18 = arith.constant dense<0.000000e+00> : vector<64xf32>
    %32 = vector.multi_reduction <add>, %31, %cst_18 [1] : vector<64x128xf32> to vector<64xf32>
    %33 = vector.shape_cast %32 : vector<64xf32> to vector<64x1xf32>
    %34 = tpu.reciprocal %33 {approx = true} : vector<64x1xf32> -> vector<64x1xf32>
    %35 = vector.broadcast %34 : vector<64x1xf32> to vector<64x128xf32>
    %36 = arith.mulf %31, %35 : vector<64x128xf32>
    %cst_19 = arith.constant dense<0.000000e+00> : vector<64x8xf32>
    %37 = tpu.matmul %36, %22, %cst_19 {dimension_numbers = #tpu.dot_dimension_numbers<[1], [0], [0], [1], [0, 0, 1, 1], [], []>} : vector<64x128xf32>, vector<128x8xf32>, vector<64x8xf32> -> vector<64x8xf32>
    %38 = vector.shape_cast %37 : vector<64x8xf32> to vector<4x2x8x8xf32>
    %39 = tpu.transpose %38, [1, 2, 0, 3] : vector<4x2x8x8xf32> -> vector<2x8x4x8xf32>
    %40 = vector.shape_cast %39 : vector<2x8x4x8xf32> to vector<16x32xf32>
    %cst_20 = arith.constant dense<0.000000e+00> : vector<16x32xf32>
    %41 = tpu.matmul %40, %5, %cst_20 {dimension_numbers = #tpu.dot_dimension_numbers<[1], [0], [0], [1], [0, 0, 1, 1], [], []>} : vector<16x32xf32>, vector<32x32xf32>, vector<16x32xf32> -> vector<16x32xf32>
    %42 = vector.broadcast %9 : vector<1x32xf32> to vector<16x32xf32>
    %43 = arith.addf %41, %42 : vector<16x32xf32>
    %44 = arith.addf %43, %0 : vector<16x32xf32>
    %cst_21 = arith.constant dense<0.000000e+00> : vector<16x128xf32>
    %45 = tpu.matmul %1, %3, %cst_21 {dimension_numbers = #tpu.dot_dimension_numbers<[1], [0], [0], [1], [0, 0, 1, 1], [], []>} : vector<16x32xf32>, vector<32x128xf32>, vector<16x128xf32> -> vector<16x128xf32>
    %46 = vector.shape_cast %45 : vector<16x128xf32> to vector<16x16x8xf32>
    %47 = tpu.transpose %46, [1, 0, 2] : vector<16x16x8xf32> -> vector<16x16x8xf32>
    %48 = vector.shape_cast %47 : vector<16x16x8xf32> to vector<4x64x8xf32>
    %cst_22 = arith.constant dense<0.000000e+00> : vector<16x128xf32>
    %49 = tpu.matmul %44, %4, %cst_22 {dimension_numbers = #tpu.dot_dimension_numbers<[1], [0], [0], [1], [0, 0, 1, 1], [], []>} : vector<16x32xf32>, vector<32x128xf32>, vector<16x128xf32> -> vector<16x128xf32>
    %50 = vector.shape_cast %49 : vector<16x128xf32> to vector<16x16x8xf32>
    %51 = tpu.transpose %50, [1, 0, 2] : vector<16x16x8xf32> -> vector<16x16x8xf32>
    %52 = vector.shape_cast %51 : vector<16x16x8xf32> to vector<4x64x8xf32>
    %53 = vector.extract_strided_slice %48 {offsets = [0, 0, 0], sizes = [2, 64, 8], strides = [1, 1, 1]} : vector<4x64x8xf32> to vector<2x64x8xf32>
    %54 = vector.shape_cast %53 : vector<2x64x8xf32> to vector<128x8xf32>
    %55 = vector.extract_strided_slice %48 {offsets = [1, 0, 0], sizes = [2, 64, 8], strides = [1, 1, 1]} : vector<4x64x8xf32> to vector<2x64x8xf32>
    %56 = vector.shape_cast %55 : vector<2x64x8xf32> to vector<128x8xf32>
    %57 = vector.extract_strided_slice %52 {offsets = [0, 0, 0], sizes = [1, 64, 8], strides = [1, 1, 1]} : vector<4x64x8xf32> to vector<1x64x8xf32>
    %58 = vector.shape_cast %57 : vector<1x64x8xf32> to vector<64x8xf32>
    "tpu.trace_start"() <{level = 10 : i32, message = "qd,kd->qk"}> : () -> ()
    %cst_23 = arith.constant dense<0.000000e+00> : vector<64x128xf32>
    %59 = tpu.matmul %58, %54, %cst_23 {dimension_numbers = #tpu.dot_dimension_numbers<[1], [1], [0], [0], [0, 0, 1, 0], [], []>} : vector<64x8xf32>, vector<128x8xf32>, vector<64x128xf32> -> vector<64x128xf32>
    "tpu.trace_stop"() : () -> ()
    %60 = arith.addf %59, %14 : vector<64x128xf32>
    %cst_24 = arith.constant dense<0xFF800000> : vector<64xf32>
    %61 = vector.multi_reduction <maximumf>, %60, %cst_24 [1] : vector<64x128xf32> to vector<64xf32>
    %62 = vector.shape_cast %61 : vector<64xf32> to vector<64x1xf32>
    %63 = vector.broadcast %62 : vector<64x1xf32> to vector<64x128xf32>
    %64 = arith.subf %60, %63 : vector<64x128xf32>
    %65 = math.exp %64 : vector<64x128xf32>
    %cst_25 = arith.constant dense<0.000000e+00> : vector<64xf32>
    %66 = vector.multi_reduction <add>, %65, %cst_25 [1] : vector<64x128xf32> to vector<64xf32>
    %67 = vector.shape_cast %66 : vector<64xf32> to vector<64x1xf32>
    %68 = tpu.reciprocal %67 {approx = true} : vector<64x1xf32> -> vector<64x1xf32>
    %69 = vector.broadcast %68 : vector<64x1xf32> to vector<64x128xf32>
    %70 = arith.mulf %65, %69 : vector<64x128xf32>
    %cst_26 = arith.constant dense<0.000000e+00> : vector<64x8xf32>
    %71 = tpu.matmul %70, %56, %cst_26 {dimension_numbers = #tpu.dot_dimension_numbers<[1], [0], [0], [1], [0, 0, 1, 1], [], []>} : vector<64x128xf32>, vector<128x8xf32>, vector<64x8xf32> -> vector<64x8xf32>
    %72 = vector.shape_cast %71 : vector<64x8xf32> to vector<4x2x8x8xf32>
    %73 = tpu.transpose %72, [1, 2, 0, 3] : vector<4x2x8x8xf32> -> vector<2x8x4x8xf32>
    %74 = vector.shape_cast %73 : vector<2x8x4x8xf32> to vector<16x32xf32>
    %cst_27 = arith.constant dense<0.000000e+00> : vector<16x32xf32>
    %75 = tpu.matmul %74, %6, %cst_27 {dimension_numbers = #tpu.dot_dimension_numbers<[1], [0], [0], [1], [0, 0, 1, 1], [], []>} : vector<16x32xf32>, vector<32x32xf32>, vector<16x32xf32> -> vector<16x32xf32>
    %76 = vector.broadcast %10 : vector<1x32xf32> to vector<16x32xf32>
    %77 = arith.addf %75, %76 : vector<16x32xf32>
    %78 = arith.addf %77, %44 : vector<16x32xf32>
    %cst_28 = arith.constant dense<0.000000e+00> : vector<16x64xf32>
    %79 = tpu.matmul %78, %7, %cst_28 {dimension_numbers = #tpu.dot_dimension_numbers<[1], [0], [0], [1], [0, 0, 1, 1], [], []>} : vector<16x32xf32>, vector<32x64xf32>, vector<16x64xf32> -> vector<16x64xf32>
    %80 = vector.broadcast %11 : vector<1x64xf32> to vector<16x64xf32>
    %81 = arith.addf %79, %80 : vector<16x64xf32>
    %cst_29 = arith.constant 0.000000e+00 : f32
    %82 = vector.broadcast %cst_29 : f32 to vector<16x64xf32>
    %83 = arith.maximumf %81, %82 : vector<16x64xf32>
    %cst_30 = arith.constant dense<0.000000e+00> : vector<16x32xf32>
    %84 = tpu.matmul %83, %8, %cst_30 {dimension_numbers = #tpu.dot_dimension_numbers<[1], [0], [0], [1], [0, 0, 1, 1], [], []>} : vector<16x64xf32>, vector<64x32xf32>, vector<16x32xf32> -> vector<16x32xf32>
    %85 = vector.broadcast %12 : vector<1x32xf32> to vector<16x32xf32>
    %86 = arith.addf %84, %85 : vector<16x32xf32>
    %87 = arith.addf %86, %78 : vector<16x32xf32>
    %c0_31 = arith.constant 0 : index
    %c0_32 = arith.constant 0 : index
    %88 = vector.load %arg2[%c0_31, %c0_32] : memref<32x32xf32, #tpu.memory_space<vmem>>, vector<16x32xf32>
    tpu.vector_store %arg2[%c0_31, %c0_32], %87 {strides = array<i32>} : memref<32x32xf32, #tpu.memory_space<vmem>>, vector<16x32xf32>,
    %c16_33 = arith.constant 16 : index
    %c0_34 = arith.constant 0 : index
    %89 = vector.load %arg2[%c16_33, %c0_34] : memref<32x32xf32, #tpu.memory_space<vmem>>, vector<16x32xf32>
    tpu.vector_store %arg2[%c16_33, %c0_34], %1 {strides = array<i32>} : memref<32x32xf32, #tpu.memory_space<vmem>>, vector<16x32xf32>,
    return
  }
}

</mosaic_0001>

<llo_original>
// kernel: _decoder_layer_impl.1
$region0: #{_decoder_layer_impl.1}
  #allocation0 [shape = 'u32[]', space=smem, size = 0x4, offset = 0x4, fixed_abs, tag = 'smem constant byte address 0x4 - core index']
  #allocation1 [shape = 'u32[72,128]{1,0:T(1,128)}', space=vmem, size = 0x9000, scoped, tag = 'internal scratch']
  %s0 = inlined_call_operand.vmem [shape: f32[32,32], index: 0, kind: input, shape index: {}, may-alias: {0,2}]
  %s1 = inlined_call_operand.hbm [shape: f32[392,128], index: 1, kind: input, shape index: {}]
  %s2 = inlined_call_operand.vmem [shape: f32[32,32], index: 2, kind: output, shape index: {}, may-alias: {0,2}]
  %s3 = sld [smem:[#allocation0]]
  $region22: #{_decoder_layer_impl.1} parent=0
    _
  %s5 = ssub.s32 1, %s3
  %s6 = scalar_select 0, %s5, %s3
  $region1: #{_decoder_layer_impl.1} parent=0
    #allocation2 [shape = 'u8[200704]{0}', space=vmem, size = 0x31000, scoped, tag = 'input window, operand 1, single buffered']
    #allocation3 [shape = 's32[1]{0}', space=sflag, size = 0x4, scoped, tag = 'scoped memory for _decoder_layer_impl.1']
    %7 = vsyncpa [#allocation3], 0
    // Predicated region
    $region2: #{_decoder_layer_impl.1} parent=1 // pred_check
      _
    $region3: #{_decoder_layer_impl.1} parent=1 // pred_check_branch
      %9 = sbr.rel (0) target = $region5
    $region4: #{_decoder_layer_impl.1} parent=1 // pred_region
      _
    $region5: #{_decoder_layer_impl.1} parent=1 // pred_fallthru
      _
    // Predicated region
    $region6: #{_decoder_layer_impl.1} parent=1 // pred_check
      _
    $region7: #{_decoder_layer_impl.1} parent=1 // pred_check_branch
      %11 = sbr.rel (0) target = $region9
    $region8: #{_decoder_layer_impl.1} parent=1 // pred_region
      %13 = vsyncadd [#allocation3], 0
      %s14 = sshll.u32 %s1, 4
      %s15 = int_to_ptr.hbm [resolvable:$true] %s14
      %s16 = sshll.u32 [#allocation2], 4
      %s17 = int_to_ptr.vmem [resolvable:$true] %s16
      %22 = dma.hbm_to_vmem [thread:$0]  %s15, 6272, %s17, [#allocation3], 128, 128, 8
    $region9: #{_decoder_layer_impl.1} parent=1 // pred_fallthru
      _
    // Predicated region
    $region10: #{_decoder_layer_impl.1} parent=1 // pred_check
      _
    $region11: #{_decoder_layer_impl.1} parent=1 // pred_check_branch
      %24 = sbr.rel (0) target = $region13
    $region12: #{_decoder_layer_impl.1} parent=1 // pred_region
      %26 = dma.done [#allocation3], 6272
    $region13: #{_decoder_layer_impl.1} parent=1 // pred_fallthru
      _
    %v27 = vld [vmem:[%s0] sm:$0xff]
    %v28 = vld [vmem:[%s0 + $0x8] sm:$0xff]
    %v29 = vld [vmem:[%s0 + $0x10] sm:$0xff]
    %v30 = vld [vmem:[%s0 + $0x18] sm:$0xff]
    %v31 = vld [vmem:[#allocation2] sm:$0xff]
    %v32 = vld [vmem:[#allocation2 + $0x8] sm:$0xff]
    %v33 = vld [vmem:[#allocation2 + $0x10] sm:$0xff]
    %v34 = vld [vmem:[#allocation2 + $0x18] sm:$0xff]
    %v35 = vld [vmem:[#allocation2 + $0x20] sm:$0xff]
    %v36 = vld [vmem:[#allocation2 + $0x28] sm:$0xff]
    %v37 = vld [vmem:[#allocation2 + $0x30] sm:$0xff]
    %v38 = vld [vmem:[#allocation2 + $0x38] sm:$0xff]
    %v39 = vld [vmem:[#allocation2 + $0x40] sm:$0xff]
    %v40 = vld [vmem:[#allocation2 + $0x48] sm:$0xff]
    %v41 = vld [vmem:[#allocation2 + $0x50] sm:$0xff]
    %v42 = vld [vmem:[#allocation2 + $0x58] sm:$0xff]
    %v43 = vld [vmem:[#allocation2 + $0x60] sm:$0xff]
    %v44 = vld [vmem:[#allocation2 + $0x68] sm:$0xff]
    %v45 = vld [vmem:[#allocation2 + $0x70] sm:$0xff]
    %v46 = vld [vmem:[#allocation2 + $0x78] sm:$0xff]
    %v47 = vld [vmem:[#allocation2 + $0x80] sm:$0xff]
    %v48 = vld [vmem:[#allocation2 + $0x88] sm:$0xff]
    %v49 = vld [vmem:[#allocation2 + $0x90] sm:$0xff]
    %v50 = vld [vmem:[#allocation2 + $0x98] sm:$0xff]
    %v51 = vld [vmem:[#allocation2 + $0xa0] sm:$0xff]
    %v52 = vld [vmem:[#allocation2 + $0xa8] sm:$0xff]
    %v53 = vld [vmem:[#allocation2 + $0xb0] sm:$0xff]
    %v54 = vld [vmem:[#allocation2 + $0xb8] sm:$0xff]
    %v55 = vld [vmem:[#allocation2 + $0xc0] sm:$0xff]
    %v56 = vld [vmem:[#allocation2 + $0xc8] sm:$0xff]
    %v57 = vld [vmem:[#allocation2 + $0xd0] sm:$0xff]
    %v58 = vld [vmem:[#allocation2 + $0xd8] sm:$0xff]
    %v59 = vld [vmem:[#allocation2 + $0xe0] sm:$0xff]
    %v60 = vld [vmem:[#allocation2 + $0xe8] sm:$0xff]
    %v61 = vld [vmem:[#allocation2 + $0xf0] sm:$0xff]
    %v62 = vld [vmem:[#allocation2 + $0xf8] sm:$0xff]
    %v63 = vld [vmem:[#allocation2 + $0x100] sm:$0x1]
    %v64 = vld [vmem:[#allocation2 + $0x101] sm:$0x1]
    %v65 = vld [vmem:[#allocation2 + $0x102] sm:$0x1]
    %v66 = vld [vmem:[#allocation2 + $0x103] sm:$0x1]
    %v67 = vld [vmem:[#allocation2 + $0x108] sm:$0xff]
    %v68 = vld [vmem:[#allocation2 + $0x110] sm:$0xff]
    %v69 = vld [vmem:[#allocation2 + $0x118] sm:$0xff]
    %v70 = vld [vmem:[#allocation2 + $0x120] sm:$0xff]
    %v71 = vld [vmem:[#allocation2 + $0x128] sm:$0xff]
    %v72 = vld [vmem:[#allocation2 + $0x130] sm:$0xff]
    %v73 = vld [vmem:[#allocation2 + $0x138] sm:$0xff]
    %v74 = vld [vmem:[#allocation2 + $0x140] sm:$0xff]
    %v75 = vld [vmem:[#allocation2 + $0x148] sm:$0xff]
    %v76 = vld [vmem:[#allocation2 + $0x150] sm:$0xff]
    %v77 = vld [vmem:[#allocation2 + $0x158] sm:$0xff]
    %v78 = vld [vmem:[#allocation2 + $0x160] sm:$0xff]
    %v79 = vld [vmem:[#allocation2 + $0x168] sm:$0xff]
    %v80 = vld [vmem:[#allocation2 + $0x170] sm:$0xff]
    %v81 = vld [vmem:[#allocation2 + $0x178] sm:$0xff]
    %v82 = vld [vmem:[#allocation2 + $0x180] sm:$0xff]
    %vm83 = vcmask 261120
    %v85 = vsel %vm83, %v27, 0
    %v88 = vsel %vm83, %v28, 0
    %90 = vmatpush.msra.mxu0 0.0
    %91 = vmatpush.msra.mxu0 0.0
    %92 = vmatpush.msra.mxu0 0.0
    %93 = vmatpush.msra.mxu0 0.0
    %94 = vmatpush.msra.mxu0 0.0
    %95 = vmatpush.msra.mxu0 0.0
    %96 = vmatpush.msra.mxu0 0.0
    %97 = vmatpush.msra.mxu0 0.0
    %98 = vmatpush.msra.mxu0 0.0
    %99 = vmatpush.msra.mxu0 0.0
    %100 = vmatpush.msra.mxu0 0.0
    %101 = vmatpush.msra.mxu0 0.0
    %102 = vmatpush.msra.mxu0 %v34
    %103 = vmatpush.msra.mxu0 %v33
    %104 = vmatpush.msra.mxu0 %v32
    %105 = vmatpush.msra.mxu0 %v31
    %106 = vmatmul.f32.gmra.mxu0 %v85
    %v107 = vpop.f32.mrf.mxu0
    %v108 = vadd.f32 0.0, %v107
    %109 = vmatmul.f32.gmra.mxu0 %v88
    %v110 = vpop.f32.mrf.mxu0
    %v111 = vadd.f32 0.0, %v110
    %112 = vdwg.mxu0
    %115 = vrot.lane.b32.xlu0 %v108, 120
    %v116 = vpop.permute.xlu0 %115
    %117 = vrot.lane.b32.xlu0 %v111, 120
    %v118 = vpop.permute.xlu0 %117
    %121 = vrot.lane.b32.xlu0 %v108, 112
    %v122 = vpop.permute.xlu0 %121
    %123 = vrot.lane.b32.xlu0 %v111, 112
    %v124 = vpop.permute.xlu0 %123
    %127 = vrot.lane.b32.xlu0 %v108, 104
    %v128 = vpop.permute.xlu0 %127
    %129 = vrot.lane.b32.xlu0 %v111, 104
    %v130 = vpop.permute.xlu0 %129
    %133 = vrot.lane.b32.xlu0 %v108, 96
    %v134 = vpop.permute.xlu0 %133
    %135 = vrot.lane.b32.xlu0 %v111, 96
    %v136 = vpop.permute.xlu0 %135
    %139 = vrot.lane.b32.xlu0 %v108, 88
    %v140 = vpop.permute.xlu0 %139
    %141 = vrot.lane.b32.xlu0 %v111, 88
    %v142 = vpop.permute.xlu0 %141
    %145 = vrot.lane.b32.xlu0 %v108, 80
    %v146 = vpop.permute.xlu0 %145
    %147 = vrot.lane.b32.xlu0 %v111, 80
    %v148 = vpop.permute.xlu0 %147
    %151 = vrot.lane.b32.xlu0 %v108, 72
    %v152 = vpop.permute.xlu0 %151
    %153 = vrot.lane.b32.xlu0 %v111, 72
    %v154 = vpop.permute.xlu0 %153
    %157 = vrot.lane.b32.xlu0 %v108, 64
    %v158 = vpop.permute.xlu0 %157
    %159 = vrot.lane.b32.xlu0 %v111, 64
    %v160 = vpop.permute.xlu0 %159
    %163 = vrot.lane.b32.xlu0 %v108, 56
    %v164 = vpop.permute.xlu0 %163
    %165 = vrot.lane.b32.xlu0 %v111, 56
    %v166 = vpop.permute.xlu0 %165
    %169 = vrot.lane.b32.xlu0 %v108, 48
    %v170 = vpop.permute.xlu0 %169
    %171 = vrot.lane.b32.xlu0 %v111, 48
    %v172 = vpop.permute.xlu0 %171
    %175 = vrot.lane.b32.xlu0 %v108, 40
    %v176 = vpop.permute.xlu0 %175
    %177 = vrot.lane.b32.xlu0 %v111, 40
    %v178 = vpop.permute.xlu0 %177
    %181 = vrot.lane.b32.xlu0 %v108, 32
    %v182 = vpop.permute.xlu0 %181
    %183 = vrot.lane.b32.xlu0 %v111, 32
    %v184 = vpop.permute.xlu0 %183
    %187 = vrot.lane.b32.xlu0 %v108, 24
    %v188 = vpop.permute.xlu0 %187
    %189 = vrot.lane.b32.xlu0 %v111, 24
    %v190 = vpop.permute.xlu0 %189
    %193 = vrot.lane.b32.xlu0 %v108, 16
    %v194 = vpop.permute.xlu0 %193
    %195 = vrot.lane.b32.xlu0 %v111, 16
    %v196 = vpop.permute.xlu0 %195
    %199 = vrot.lane.b32.xlu0 %v108, 8
    %v200 = vpop.permute.xlu0 %199
    %201 = vrot.lane.b32.xlu0 %v111, 8
    %v202 = vpop.permute.xlu0 %201
    %v205 = vrot.slane %v122, 4
    %vm206 = vcmask 1047556
    %v207 = vsel %vm206, %v205, %v108
    %v208 = vrot.slane %v108, 4
    %v209 = vsel %vm206, %v122, %v208
    %v211 = vunpack.c.l.s4 1983009808
    %v212 = vunpack.c.0.s8 %v211
    %v213 = vperm.slane %v207, %v212
    %v215 = vunpack.c.l.s4 1983009808
    %v216 = vunpack.c.0.s8 %v215
    %v217 = vperm.slane %v209, %v216
    %v218 = vrot.slane %v128, 4
    %v219 = vsel %vm206, %v218, %v116
    %v220 = vrot.slane %v116, 4
    %v221 = vsel %vm206, %v128, %v220
    %v223 = vunpack.c.l.s4 1983009808
    %v224 = vunpack.c.0.s8 %v223
    %v225 = vperm.slane %v219, %v224
    %v227 = vunpack.c.l.s4 1983009808
    %v228 = vunpack.c.0.s8 %v227
    %v229 = vperm.slane %v221, %v228
    %v230 = vrot.slane %v146, 4
    %v231 = vsel %vm206, %v230, %v134
    %v232 = vrot.slane %v134, 4
    %v233 = vsel %vm206, %v146, %v232
    %v235 = vunpack.c.l.s4 1983009808
    %v236 = vunpack.c.0.s8 %v235
    %v237 = vperm.slane %v231, %v236
    %v239 = vunpack.c.l.s4 1983009808
    %v240 = vunpack.c.0.s8 %v239
    %v241 = vperm.slane %v233, %v240
    %v242 = vrot.slane %v152, 4
    %v243 = vsel %vm206, %v242, %v140
    %v244 = vrot.slane %v140, 4
    %v245 = vsel %vm206, %v152, %v244
    %v247 = vunpack.c.l.s4 1983009808
    %v248 = vunpack.c.0.s8 %v247
    %v249 = vperm.slane %v243, %v248
    %v251 = vunpack.c.l.s4 1983009808
    %v252 = vunpack.c.0.s8 %v251
    %v253 = vperm.slane %v245, %v252
    %v254 = vrot.slane %v225, 4
    %v255 = vsel %vm206, %v254, %v213
    %v256 = vrot.slane %v213, 4
    %v257 = vsel %vm206, %v225, %v256
    %v259 = vunpack.c.l.s4 1934713408
    %v260 = vunpack.c.0.s8 %v259
    %v261 = vperm.slane %v255, %v260
    %v263 = vunpack.c.l.s4 1934713408
    %v264 = vunpack.c.0.s8 %v263
    %v265 = vperm.slane %v257, %v264
    %v266 = vrot.slane %v229, 4
    %v267 = vsel %vm206, %v266, %v217
    %v268 = vrot.slane %v217, 4
    %v269 = vsel %vm206, %v229, %v268
    %v271 = vunpack.c.l.s4 1934713408
    %v272 = vunpack.c.0.s8 %v271
    %v273 = vperm.slane %v267, %v272
    %v275 = vunpack.c.l.s4 1934713408
    %v276 = vunpack.c.0.s8 %v275
    %v277 = vperm.slane %v269, %v276
    %v278 = vrot.slane %v249, 4
    %v279 = vsel %vm206, %v278, %v237
    %v280 = vrot.slane %v237, 4
    %v281 = vsel %vm206, %v249, %v280
    %v283 = vunpack.c.l.s4 1934713408
    %v284 = vunpack.c.0.s8 %v283
    %v285 = vperm.slane %v279, %v284
    %v287 = vunpack.c.l.s4 1934713408
    %v288 = vunpack.c.0.s8 %v287
    %v289 = vperm.slane %v281, %v288
    %v290 = vrot.slane %v253, 4
    %v291 = vsel %vm206, %v290, %v241
    %v292 = vrot.slane %v241, 4
    %v293 = vsel %vm206, %v253, %v292
    %v295 = vunpack.c.l.s4 1934713408
    %v296 = vunpack.c.0.s8 %v295
    %v297 = vperm.slane %v291, %v296
    %v299 = vunpack.c.l.s4 1934713408
    %v300 = vunpack.c.0.s8 %v299
    %v301 = vperm.slane %v293, %v300
    %v302 = vrot.slane %v285, 4
    %v303 = vsel %vm206, %v302, %v261
    %v304 = vrot.slane %v261, 4
    %v305 = vsel %vm206, %v285, %v304
    %v306 = vrot.slane %v289, 4
    %v307 = vsel %vm206, %v306, %v265
    %v308 = vrot.slane %v265, 4
    %v309 = vsel %vm206, %v289, %v308
    %v310 = vrot.slane %v297, 4
    %v311 = vsel %vm206, %v310, %v273
    %v312 = vrot.slane %v273, 4
    %v313 = vsel %vm206, %v297, %v312
    %v314 = vrot.slane %v301, 4
    %v315 = vsel %vm206, %v314, %v277
    %v316 = vrot.slane %v277, 4
    %v317 = vsel %vm206, %v301, %v316
    %v318 = vrot.slane %v170, 4
    %v319 = vsel %vm206, %v318, %v158
    %v320 = vrot.slane %v158, 4
    %v321 = vsel %vm206, %v170, %v320
    %v323 = vunpack.c.l.s4 1983009808
    %v324 = vunpack.c.0.s8 %v323
    %v325 = vperm.slane %v319, %v324
    %v327 = vunpack.c.l.s4 1983009808
    %v328 = vunpack.c.0.s8 %v327
    %v329 = vperm.slane %v321, %v328
    %v330 = vrot.slane %v176, 4
    %v331 = vsel %vm206, %v330, %v164
    %v332 = vrot.slane %v164, 4
    %v333 = vsel %vm206, %v176, %v332
    %v335 = vunpack.c.l.s4 1983009808
    %v336 = vunpack.c.0.s8 %v335
    %v337 = vperm.slane %v331, %v336
    %v339 = vunpack.c.l.s4 1983009808
    %v340 = vunpack.c.0.s8 %v339
    %v341 = vperm.slane %v333, %v340
    %v342 = vrot.slane %v194, 4
    %v343 = vsel %vm206, %v342, %v182
    %v344 = vrot.slane %v182, 4
    %v345 = vsel %vm206, %v194, %v344
    %v347 = vunpack.c.l.s4 1983009808
    %v348 = vunpack.c.0.s8 %v347
    %v349 = vperm.slane %v343, %v348
    %v351 = vunpack.c.l.s4 1983009808
    %v352 = vunpack.c.0.s8 %v351
    %v353 = vperm.slane %v345, %v352
    %v354 = vrot.slane %v200, 4
    %v355 = vsel %vm206, %v354, %v188
    %v356 = vrot.slane %v188, 4
    %v357 = vsel %vm206, %v200, %v356
    %v359 = vunpack.c.l.s4 1983009808
    %v360 = vunpack.c.0.s8 %v359
    %v361 = vperm.slane %v355, %v360
    %v363 = vunpack.c.l.s4 1983009808
    %v364 = vunpack.c.0.s8 %v363
    %v365 = vperm.slane %v357, %v364
    %v366 = vrot.slane %v337, 4
    %v367 = vsel %vm206, %v366, %v325
    %v368 = vrot.slane %v325, 4
    %v369 = vsel %vm206, %v337, %v368
    %v371 = vunpack.c.l.s4 1934713408
    %v372 = vunpack.c.0.s8 %v371
    %v373 = vperm.slane %v367, %v372
    %v375 = vunpack.c.l.s4 1934713408
    %v376 = vunpack.c.0.s8 %v375
    %v377 = vperm.slane %v369, %v376
    %v378 = vrot.slane %v341, 4
    %v379 = vsel %vm206, %v378, %v329
    %v380 = vrot.slane %v329, 4
    %v381 = vsel %vm206, %v341, %v380
    %v383 = vunpack.c.l.s4 1934713408
    %v384 = vunpack.c.0.s8 %v383
    %v385 = vperm.slane %v379, %v384
    %v387 = vunpack.c.l.s4 1934713408
    %v388 = vunpack.c.0.s8 %v387
    %v389 = vperm.slane %v381, %v388
    %v390 = vrot.slane %v361, 4
    %v391 = vsel %vm206, %v390, %v349
    %v392 = vrot.slane %v349, 4
    %v393 = vsel %vm206, %v361, %v392
    %v395 = vunpack.c.l.s4 1934713408
    %v396 = vunpack.c.0.s8 %v395
    %v397 = vperm.slane %v391, %v396
    %v399 = vunpack.c.l.s4 1934713408
    %v400 = vunpack.c.0.s8 %v399
    %v401 = vperm.slane %v393, %v400
    %v402 = vrot.slane %v365, 4
    %v403 = vsel %vm206, %v402, %v353
    %v404 = vrot.slane %v353, 4
    %v405 = vsel %vm206, %v365, %v404
    %v407 = vunpack.c.l.s4 1934713408
    %v408 = vunpack.c.0.s8 %v407
    %v409 = vperm.slane %v403, %v408
    %v411 = vunpack.c.l.s4 1934713408
    %v412 = vunpack.c.0.s8 %v411
    %v413 = vperm.slane %v405, %v412
    %v414 = vrot.slane %v397, 4
    %v415 = vsel %vm206, %v414, %v373
    %v416 = vrot.slane %v373, 4
    %v417 = vsel %vm206, %v397, %v416
    %v418 = vrot.slane %v401, 4
    %v419 = vsel %vm206, %v418, %v377
    %v420 = vrot.slane %v377, 4
    %v421 = vsel %vm206, %v401, %v420
    %v422 = vrot.slane %v409, 4
    %v423 = vsel %vm206, %v422, %v385
    %v424 = vrot.slane %v385, 4
    %v425 = vsel %vm206, %v409, %v424
    %v426 = vrot.slane %v413, 4
    %v427 = vsel %vm206, %v426, %v389
    %v428 = vrot.slane %v389, 4
    %v429 = vsel %vm206, %v413, %v428
    %v430 = vrot.slane %v124, 4
    %v431 = vsel %vm206, %v430, %v111
    %v432 = vrot.slane %v111, 4
    %v433 = vsel %vm206, %v124, %v432
    %v435 = vunpack.c.l.s4 1983009808
    %v436 = vunpack.c.0.s8 %v435
    %v437 = vperm.slane %v431, %v436
    %v439 = vunpack.c.l.s4 1983009808
    %v440 = vunpack.c.0.s8 %v439
    %v441 = vperm.slane %v433, %v440
    %v442 = vrot.slane %v130, 4
    %v443 = vsel %vm206, %v442, %v118
    %v444 = vrot.slane %v118, 4
    %v445 = vsel %vm206, %v130, %v444
    %v447 = vunpack.c.l.s4 1983009808
    %v448 = vunpack.c.0.s8 %v447
    %v449 = vperm.slane %v443, %v448
    %v451 = vunpack.c.l.s4 1983009808
    %v452 = vunpack.c.0.s8 %v451
    %v453 = vperm.slane %v445, %v452
    %v454 = vrot.slane %v148, 4
    %v455 = vsel %vm206, %v454, %v136
    %v456 = vrot.slane %v136, 4
    %v457 = vsel %vm206, %v148, %v456
    %v459 = vunpack.c.l.s4 1983009808
    %v460 = vunpack.c.0.s8 %v459
    %v461 = vperm.slane %v455, %v460
    %v463 = vunpack.c.l.s4 1983009808
    %v464 = vunpack.c.0.s8 %v463
    %v465 = vperm.slane %v457, %v464
    %v466 = vrot.slane %v154, 4
    %v467 = vsel %vm206, %v466, %v142
    %v468 = vrot.slane %v142, 4
    %v469 = vsel %vm206, %v154, %v468
    %v471 = vunpack.c.l.s4 1983009808
    %v472 = vunpack.c.0.s8 %v471
    %v473 = vperm.slane %v467, %v472
    %v475 = vunpack.c.l.s4 1983009808
    %v476 = vunpack.c.0.s8 %v475
    %v477 = vperm.slane %v469, %v476
    %v478 = vrot.slane %v449, 4
    %v479 = vsel %vm206, %v478, %v437
    %v480 = vrot.slane %v437, 4
    %v481 = vsel %vm206, %v449, %v480
    %v483 = vunpack.c.l.s4 1934713408
    %v484 = vunpack.c.0.s8 %v483
    %v485 = vperm.slane %v479, %v484
    %v487 = vunpack.c.l.s4 1934713408
    %v488 = vunpack.c.0.s8 %v487
    %v489 = vperm.slane %v481, %v488
    %v490 = vrot.slane %v453, 4
    %v491 = vsel %vm206, %v490, %v441
    %v492 = vrot.slane %v441, 4
    %v493 = vsel %vm206, %v453, %v492
    %v495 = vunpack.c.l.s4 1934713408
    %v496 = vunpack.c.0.s8 %v495
    %v497 = vperm.slane %v491, %v496
    %v499 = vunpack.c.l.s4 1934713408
    %v500 = vunpack.c.0.s8 %v499
    %v501 = vperm.slane %v493, %v500
    %v502 = vrot.slane %v473, 4
    %v503 = vsel %vm206, %v502, %v461
    %v504 = vrot.slane %v461, 4
    %v505 = vsel %vm206, %v473, %v504
    %v507 = vunpack.c.l.s4 1934713408
    %v508 = vunpack.c.0.s8 %v507
    %v509 = vperm.slane %v503, %v508
    %v511 = vunpack.c.l.s4 1934713408
    %v512 = vunpack.c.0.s8 %v511
    %v513 = vperm.slane %v505, %v512
    %v514 = vrot.slane %v477, 4
    %v515 = vsel %vm206, %v514, %v465
    %v516 = vrot.slane %v465, 4
    %v517 = vsel %vm206, %v477, %v516
    %v519 = vunpack.c.l.s4 1934713408
    %v520 = vunpack.c.0.s8 %v519
    %v521 = vperm.slane %v515, %v520
    %v523 = vunpack.c.l.s4 1934713408
    %v524 = vunpack.c.0.s8 %v523
    %v525 = vperm.slane %v517, %v524
    %v526 = vrot.slane %v509, 4
    %v527 = vsel %vm206, %v526, %v485
    %v528 = vrot.slane %v485, 4
    %v529 = vsel %vm206, %v509, %v528
    %v530 = vrot.slane %v513, 4
    %v531 = vsel %vm206, %v530, %v489
    %v532 = vrot.slane %v489, 4
    %v533 = vsel %vm206, %v513, %v532
    %v534 = vrot.slane %v521, 4
    %v535 = vsel %vm206, %v534, %v497
    %v536 = vrot.slane %v497, 4
    %v537 = vsel %vm206, %v521, %v536
    %v538 = vrot.slane %v525, 4
    %v539 = vsel %vm206, %v538, %v501
    %v540 = vrot.slane %v501, 4
    %v541 = vsel %vm206, %v525, %v540
    %v542 = vrot.slane %v172, 4
    %v543 = vsel %vm206, %v542, %v160
    %v544 = vrot.slane %v160, 4
    %v545 = vsel %vm206, %v172, %v544
    %v547 = vunpack.c.l.s4 1983009808
    %v548 = vunpack.c.0.s8 %v547
    %v549 = vperm.slane %v543, %v548
    %v551 = vunpack.c.l.s4 1983009808
    %v552 = vunpack.c.0.s8 %v551
    %v553 = vperm.slane %v545, %v552
    %v554 = vrot.slane %v178, 4
    %v555 = vsel %vm206, %v554, %v166
    %v556 = vrot.slane %v166, 4
    %v557 = vsel %vm206, %v178, %v556
    %v559 = vunpack.c.l.s4 1983009808
    %v560 = vunpack.c.0.s8 %v559
    %v561 = vperm.slane %v555, %v560
    %v563 = vunpack.c.l.s4 1983009808
    %v564 = vunpack.c.0.s8 %v563
    %v565 = vperm.slane %v557, %v564
    %v566 = vrot.slane %v196, 4
    %v567 = vsel %vm206, %v566, %v184
    %v568 = vrot.slane %v184, 4
    %v569 = vsel %vm206, %v196, %v568
    %v571 = vunpack.c.l.s4 1983009808
    %v572 = vunpack.c.0.s8 %v571
    %v573 = vperm.slane %v567, %v572
    %v575 = vunpack.c.l.s4 1983009808
    %v576 = vunpack.c.0.s8 %v575
    %v577 = vperm.slane %v569, %v576
    %v578 = vrot.slane %v202, 4
    %v579 = vsel %vm206, %v578, %v190
    %v580 = vrot.slane %v190, 4
    %v581 = vsel %vm206, %v202, %v580
    %v583 = vunpack.c.l.s4 1983009808
    %v584 = vunpack.c.0.s8 %v583
    %v585 = vperm.slane %v579, %v584
    %v587 = vunpack.c.l.s4 1983009808
    %v588 = vunpack.c.0.s8 %v587
    %v589 = vperm.slane %v581, %v588
    %v590 = vrot.slane %v561, 4
    %v591 = vsel %vm206, %v590, %v549
    %v592 = vrot.slane %v549, 4
    %v593 = vsel %vm206, %v561, %v592
    %v595 = vunpack.c.l.s4 1934713408
    %v596 = vunpack.c.0.s8 %v595
    %v597 = vperm.slane %v591, %v596
    %v599 = vunpack.c.l.s4 1934713408
    %v600 = vunpack.c.0.s8 %v599
    %v601 = vperm.slane %v593, %v600
    %v602 = vrot.slane %v565, 4
    %v603 = vsel %vm206, %v602, %v553
    %v604 = vrot.slane %v553, 4
    %v605 = vsel %vm206, %v565, %v604
    %v607 = vunpack.c.l.s4 1934713408
    %v608 = vunpack.c.0.s8 %v607
    %v609 = vperm.slane %v603, %v608
    %v611 = vunpack.c.l.s4 1934713408
    %v612 = vunpack.c.0.s8 %v611
    %v613 = vperm.slane %v605, %v612
    %v614 = vrot.slane %v585, 4
    %v615 = vsel %vm206, %v614, %v573
    %v616 = vrot.slane %v573, 4
    %v617 = vsel %vm206, %v585, %v616
    %v619 = vunpack.c.l.s4 1934713408
    %v620 = vunpack.c.0.s8 %v619
    %v621 = vperm.slane %v615, %v620
    %v623 = vunpack.c.l.s4 1934713408
    %v624 = vunpack.c.0.s8 %v623
    %v625 = vperm.slane %v617, %v624
    %v626 = vrot.slane %v589, 4
    %v627 = vsel %vm206, %v626, %v577
    %v628 = vrot.slane %v577, 4
    %v629 = vsel %vm206, %v589, %v628
    %v631 = vunpack.c.l.s4 1934713408
    %v632 = vunpack.c.0.s8 %v631
    %v633 = vperm.slane %v627, %v632
    %v635 = vunpack.c.l.s4 1934713408
    %v636 = vunpack.c.0.s8 %v635
    %v637 = vperm.slane %v629, %v636
    %v638 = vrot.slane %v621, 4
    %v639 = vsel %vm206, %v638, %v597
    %v640 = vrot.slane %v597, 4
    %v641 = vsel %vm206, %v621, %v640
    %v642 = vrot.slane %v625, 4
    %v643 = vsel %vm206, %v642, %v601
    %v644 = vrot.slane %v601, 4
    %v645 = vsel %vm206, %v625, %v644
    %v646 = vrot.slane %v633, 4
    %v647 = vsel %vm206, %v646, %v609
    %v648 = vrot.slane %v609, 4
    %v649 = vsel %vm206, %v633, %v648
    %v650 = vrot.slane %v637, 4
    %v651 = vsel %vm206, %v650, %v613
    %v652 = vrot.slane %v613, 4
    %v653 = vsel %vm206, %v637, %v652
    %v654 = vrot.slane %v307, 4
    %v655 = vsel %vm206, %v654, %v303
    %v656 = vrot.slane %v303, 4
    %v657 = vsel %vm206, %v307, %v656
    %v659 = vunpack.c.l.s4 1983009808
    %v660 = vunpack.c.0.s8 %v659
    %v661 = vperm.slane %v655, %v660
    %v663 = vunpack.c.l.s4 1983009808
    %v664 = vunpack.c.0.s8 %v663
    %v665 = vperm.slane %v657, %v664
    %v666 = vrot.slane %v309, 4
    %v667 = vsel %vm206, %v666, %v305
    %v668 = vrot.slane %v305, 4
    %v669 = vsel %vm206, %v309, %v668
    %v671 = vunpack.c.l.s4 1983009808
    %v672 = vunpack.c.0.s8 %v671
    %v673 = vperm.slane %v667, %v672
    %v675 = vunpack.c.l.s4 1983009808
    %v676 = vunpack.c.0.s8 %v675
    %v677 = vperm.slane %v669, %v676
    %v678 = vrot.slane %v315, 4
    %v679 = vsel %vm206, %v678, %v311
    %v680 = vrot.slane %v311, 4
    %v681 = vsel %vm206, %v315, %v680
    %v683 = vunpack.c.l.s4 1983009808
    %v684 = vunpack.c.0.s8 %v683
    %v685 = vperm.slane %v679, %v684
    %v687 = vunpack.c.l.s4 1983009808
    %v688 = vunpack.c.0.s8 %v687
    %v689 = vperm.slane %v681, %v688
    %v690 = vrot.slane %v317, 4
    %v691 = vsel %vm206, %v690, %v313
    %v692 = vrot.slane %v313, 4
    %v693 = vsel %vm206, %v317, %v692
    %v695 = vunpack.c.l.s4 1983009808
    %v696 = vunpack.c.0.s8 %v695
    %v697 = vperm.slane %v691, %v696
    %v699 = vunpack.c.l.s4 1983009808
    %v700 = vunpack.c.0.s8 %v699
    %v701 = vperm.slane %v693, %v700
    %v702 = vrot.slane %v673, 4
    %v703 = vsel %vm206, %v702, %v661
    %v704 = vrot.slane %v661, 4
    %v705 = vsel %vm206, %v673, %v704
    %v707 = vunpack.c.l.s4 1934713408
    %v708 = vunpack.c.0.s8 %v707
    %v709 = vperm.slane %v703, %v708
    %v711 = vunpack.c.l.s4 1934713408
    %v712 = vunpack.c.0.s8 %v711
    %v713 = vperm.slane %v705, %v712
    %v714 = vrot.slane %v677, 4
    %v715 = vsel %vm206, %v714, %v665
    %v716 = vrot.slane %v665, 4
    %v717 = vsel %vm206, %v677, %v716
    %v719 = vunpack.c.l.s4 1934713408
    %v720 = vunpack.c.0.s8 %v719
    %v721 = vperm.slane %v715, %v720
    %v723 = vunpack.c.l.s4 1934713408
    %v724 = vunpack.c.0.s8 %v723
    %v725 = vperm.slane %v717, %v724
    %v726 = vrot.slane %v697, 4
    %v727 = vsel %vm206, %v726, %v685
    %v728 = vrot.slane %v685, 4
    %v729 = vsel %vm206, %v697, %v728
    %v731 = vunpack.c.l.s4 1934713408
    %v732 = vunpack.c.0.s8 %v731
    %v733 = vperm.slane %v727, %v732
    %v735 = vunpack.c.l.s4 1934713408
    %v736 = vunpack.c.0.s8 %v735
    %v737 = vperm.slane %v729, %v736
    %v738 = vrot.slane %v701, 4
    %v739 = vsel %vm206, %v738, %v689
    %v740 = vrot.slane %v689, 4
    %v741 = vsel %vm206, %v701, %v740
    %v743 = vunpack.c.l.s4 1934713408
    %v744 = vunpack.c.0.s8 %v743
    %v745 = vperm.slane %v739, %v744
    %v747 = vunpack.c.l.s4 1934713408
    %v748 = vunpack.c.0.s8 %v747
    %v749 = vperm.slane %v741, %v748
    %v750 = vrot.slane %v733, 4
    %v751 = vsel %vm206, %v750, %v709
    %v752 = vrot.slane %v709, 4
    %v753 = vsel %vm206, %v733, %v752
    %v754 = vrot.slane %v737, 4
    %v755 = vsel %vm206, %v754, %v713
    %v756 = vrot.slane %v713, 4
    %v757 = vsel %vm206, %v737, %v756
    %v758 = vrot.slane %v745, 4
    %v759 = vsel %vm206, %v758, %v721
    %v760 = vrot.slane %v721, 4
    %v761 = vsel %vm206, %v745, %v760
    %v762 = vrot.slane %v749, 4
    %v763 = vsel %vm206, %v762, %v725
    %v764 = vrot.slane %v725, 4
    %v765 = vsel %vm206, %v749, %v764
    %v766 = vrot.slane %v531, 4
    %v767 = vsel %vm206, %v766, %v527
    %v768 = vrot.slane %v527, 4
    %v769 = vsel %vm206, %v531, %v768
    %v771 = vunpack.c.l.s4 1983009808
    %v772 = vunpack.c.0.s8 %v771
    %v773 = vperm.slane %v767, %v772
    %v775 = vunpack.c.l.s4 1983009808
    %v776 = vunpack.c.0.s8 %v775
    %v777 = vperm.slane %v769, %v776
    %v778 = vrot.slane %v533, 4
    %v779 = vsel %vm206, %v778, %v529
    %v780 = vrot.slane %v529, 4
    %v781 = vsel %vm206, %v533, %v780
    %v783 = vunpack.c.l.s4 1983009808
    %v784 = vunpack.c.0.s8 %v783
    %v785 = vperm.slane %v779, %v784
    %v787 = vunpack.c.l.s4 1983009808
    %v788 = vunpack.c.0.s8 %v787
    %v789 = vperm.slane %v781, %v788
    %v790 = vrot.slane %v539, 4
    %v791 = vsel %vm206, %v790, %v535
    %v792 = vrot.slane %v535, 4
    %v793 = vsel %vm206, %v539, %v792
    %v795 = vunpack.c.l.s4 1983009808
    %v796 = vunpack.c.0.s8 %v795
    %v797 = vperm.slane %v791, %v796
    %v799 = vunpack.c.l.s4 1983009808
    %v800 = vunpack.c.0.s8 %v799
    %v801 = vperm.slane %v793, %v800
    %v802 = vrot.slane %v541, 4
    %v803 = vsel %vm206, %v802, %v537
    %v804 = vrot.slane %v537, 4
    %v805 = vsel %vm206, %v541, %v804
    %v807 = vunpack.c.l.s4 1983009808
    %v808 = vunpack.c.0.s8 %v807
    %v809 = vperm.slane %v803, %v808
    %v811 = vunpack.c.l.s4 1983009808
    %v812 = vunpack.c.0.s8 %v811
    %v813 = vperm.slane %v805, %v812
    %v814 = vrot.slane %v785, 4
    %v815 = vsel %vm206, %v814, %v773
    %v816 = vrot.slane %v773, 4
    %v817 = vsel %vm206, %v785, %v816
    %v819 = vunpack.c.l.s4 1934713408
    %v820 = vunpack.c.0.s8 %v819
    %v821 = vperm.slane %v815, %v820
    %v823 = vunpack.c.l.s4 1934713408
    %v824 = vunpack.c.0.s8 %v823
    %v825 = vperm.slane %v817, %v824
    %v826 = vrot.slane %v789, 4
    %v827 = vsel %vm206, %v826, %v777
    %v828 = vrot.slane %v777, 4
    %v829 = vsel %vm206, %v789, %v828
    %v831 = vunpack.c.l.s4 1934713408
    %v832 = vunpack.c.0.s8 %v831
    %v833 = vperm.slane %v827, %v832
    %v835 = vunpack.c.l.s4 1934713408
    %v836 = vunpack.c.0.s8 %v835
    %v837 = vperm.slane %v829, %v836
    %v838 = vrot.slane %v809, 4
    %v839 = vsel %vm206, %v838, %v797
    %v840 = vrot.slane %v797, 4
    %v841 = vsel %vm206, %v809, %v840
    %v843 = vunpack.c.l.s4 1934713408
    %v844 = vunpack.c.0.s8 %v843
    %v845 = vperm.slane %v839, %v844
    %v847 = vunpack.c.l.s4 1934713408
    %v848 = vunpack.c.0.s8 %v847
    %v849 = vperm.slane %v841, %v848
    %v850 = vrot.slane %v813, 4
    %v851 = vsel %vm206, %v850, %v801
    %v852 = vrot.slane %v801, 4
    %v853 = vsel %vm206, %v813, %v852
    %v855 = vunpack.c.l.s4 1934713408
    %v856 = vunpack.c.0.s8 %v855
    %v857 = vperm.slane %v851, %v856
    %v859 = vunpack.c.l.s4 1934713408
    %v860 = vunpack.c.0.s8 %v859
    %v861 = vperm.slane %v853, %v860
    %v862 = vrot.slane %v845, 4
    %v863 = vsel %vm206, %v862, %v821
    %v864 = vrot.slane %v821, 4
    %v865 = vsel %vm206, %v845, %v864
    %v866 = vrot.slane %v849, 4
    %v867 = vsel %vm206, %v866, %v825
    %v868 = vrot.slane %v825, 4
    %v869 = vsel %vm206, %v849, %v868
    %v870 = vrot.slane %v857, 4
    %v871 = vsel %vm206, %v870, %v833
    %v872 = vrot.slane %v833, 4
    %v873 = vsel %vm206, %v857, %v872
    %v874 = vrot.slane %v861, 4
    %v875 = vsel %vm206, %v874, %v837
    %v876 = vrot.slane %v837, 4
    %v877 = vsel %vm206, %v861, %v876
    %v878 = vrot.slane %v419, 4
    %v879 = vsel %vm206, %v878, %v415
    %v880 = vrot.slane %v415, 4
    %v881 = vsel %vm206, %v419, %v880
    %v883 = vunpack.c.l.s4 1983009808
    %v884 = vunpack.c.0.s8 %v883
    %v885 = vperm.slane %v879, %v884
    %v887 = vunpack.c.l.s4 1983009808
    %v888 = vunpack.c.0.s8 %v887
    %v889 = vperm.slane %v881, %v888
    %v890 = vrot.slane %v421, 4
    %v891 = vsel %vm206, %v890, %v417
    %v892 = vrot.slane %v417, 4
    %v893 = vsel %vm206, %v421, %v892
    %v895 = vunpack.c.l.s4 1983009808
    %v896 = vunpack.c.0.s8 %v895
    %v897 = vperm.slane %v891, %v896
    %v899 = vunpack.c.l.s4 1983009808
    %v900 = vunpack.c.0.s8 %v899
    %v901 = vperm.slane %v893, %v900
    %v902 = vrot.slane %v427, 4
    %v903 = vsel %vm206, %v902, %v423
    %v904 = vrot.slane %v423, 4
    %v905 = vsel %vm206, %v427, %v904
    %v907 = vunpack.c.l.s4 1983009808
    %v908 = vunpack.c.0.s8 %v907
    %v909 = vperm.slane %v903, %v908
    %v911 = vunpack.c.l.s4 1983009808
    %v912 = vunpack.c.0.s8 %v911
    %v913 = vperm.slane %v905, %v912
    %v914 = vrot.slane %v429, 4
    %v915 = vsel %vm206, %v914, %v425
    %v916 = vrot.slane %v425, 4
    %v917 = vsel %vm206, %v429, %v916
    %v919 = vunpack.c.l.s4 1983009808
    %v920 = vunpack.c.0.s8 %v919
    %v921 = vperm.slane %v915, %v920
    %v923 = vunpack.c.l.s4 1983009808
    %v924 = vunpack.c.0.s8 %v923
    %v925 = vperm.slane %v917, %v924
    %v926 = vrot.slane %v897, 4
    %v927 = vsel %vm206, %v926, %v885
    %v928 = vrot.slane %v885, 4
    %v929 = vsel %vm206, %v897, %v928
    %v931 = vunpack.c.l.s4 1934713408
    %v932 = vunpack.c.0.s8 %v931
    %v933 = vperm.slane %v927, %v932
    %v935 = vunpack.c.l.s4 1934713408
    %v936 = vunpack.c.0.s8 %v935
    %v937 = vperm.slane %v929, %v936
    %v938 = vrot.slane %v901, 4
    %v939 = vsel %vm206, %v938, %v889
    %v940 = vrot.slane %v889, 4
    %v941 = vsel %vm206, %v901, %v940
    %v943 = vunpack.c.l.s4 1934713408
    %v944 = vunpack.c.0.s8 %v943
    %v945 = vperm.slane %v939, %v944
    %v947 = vunpack.c.l.s4 1934713408
    %v948 = vunpack.c.0.s8 %v947
    %v949 = vperm.slane %v941, %v948
    %v950 = vrot.slane %v921, 4
    %v951 = vsel %vm206, %v950, %v909
    %v952 = vrot.slane %v909, 4
    %v953 = vsel %vm206, %v921, %v952
    %v955 = vunpack.c.l.s4 1934713408
    %v956 = vunpack.c.0.s8 %v955
    %v957 = vperm.slane %v951, %v956
    %v959 = vunpack.c.l.s4 1934713408
    %v960 = vunpack.c.0.s8 %v959
    %v961 = vperm.slane %v953, %v960
    %v962 = vrot.slane %v925, 4
    %v963 = vsel %vm206, %v962, %v913
    %v964 = vrot.slane %v913, 4
    %v965 = vsel %vm206, %v925, %v964
    %v967 = vunpack.c.l.s4 1934713408
    %v968 = vunpack.c.0.s8 %v967
    %v969 = vperm.slane %v963, %v968
    %v971 = vunpack.c.l.s4 1934713408
    %v972 = vunpack.c.0.s8 %v971
    %v973 = vperm.slane %v965, %v972
    %v974 = vrot.slane %v957, 4
    %v975 = vsel %vm206, %v974, %v933
    %v976 = vrot.slane %v933, 4
    %v977 = vsel %vm206, %v957, %v976
    %v978 = vrot.slane %v961, 4
    %v979 = vsel %vm206, %v978, %v937
    %v980 = vrot.slane %v937, 4
    %v981 = vsel %vm206, %v961, %v980
    %v982 = vrot.slane %v969, 4
    %v983 = vsel %vm206, %v982, %v945
    %v984 = vrot.slane %v945, 4
    %v985 = vsel %vm206, %v969, %v984
    %v986 = vrot.slane %v973, 4
    %v987 = vsel %vm206, %v986, %v949
    %v988 = vrot.slane %v949, 4
    %v989 = vsel %vm206, %v973, %v988
    %v990 = vrot.slane %v643, 4
    %v991 = vsel %vm206, %v990, %v639
    %v992 = vrot.slane %v639, 4
    %v993 = vsel %vm206, %v643, %v992
    %v995 = vunpack.c.l.s4 1983009808
    %v996 = vunpack.c.0.s8 %v995
    %v997 = vperm.slane %v991, %v996
    %v999 = vunpack.c.l.s4 1983009808
    %v1000 = vunpack.c.0.s8 %v999
    %v1001 = vperm.slane %v993, %v1000
    %v1002 = vrot.slane %v645, 4
    %v1003 = vsel %vm206, %v1002, %v641
    %v1004 = vrot.slane %v641, 4
    %v1005 = vsel %vm206, %v645, %v1004
    %v1007 = vunpack.c.l.s4 1983009808
    %v1008 = vunpack.c.0.s8 %v1007
    %v1009 = vperm.slane %v1003, %v1008
    %v1011 = vunpack.c.l.s4 1983009808
    %v1012 = vunpack.c.0.s8 %v1011
    %v1013 = vperm.slane %v1005, %v1012
    %v1014 = vrot.slane %v651, 4
    %v1015 = vsel %vm206, %v1014, %v647
    %v1016 = vrot.slane %v647, 4
    %v1017 = vsel %vm206, %v651, %v1016
    %v1019 = vunpack.c.l.s4 1983009808
    %v1020 = vunpack.c.0.s8 %v1019
    %v1021 = vperm.slane %v1015, %v1020
    %v1023 = vunpack.c.l.s4 1983009808
    %v1024 = vunpack.c.0.s8 %v1023
    %v1025 = vperm.slane %v1017, %v1024
    %v1026 = vrot.slane %v653, 4
    %v1027 = vsel %vm206, %v1026, %v649
    %v1028 = vrot.slane %v649, 4
    %v1029 = vsel %vm206, %v653, %v1028
    %v1031 = vunpack.c.l.s4 1983009808
    %v1032 = vunpack.c.0.s8 %v1031
    %v1033 = vperm.slane %v1027, %v1032
    %v1035 = vunpack.c.l.s4 1983009808
    %v1036 = vunpack.c.0.s8 %v1035
    %v1037 = vperm.slane %v1029, %v1036
    %v1038 = vrot.slane %v1009, 4
    %v1039 = vsel %vm206, %v1038, %v997
    %v1040 = vrot.slane %v997, 4
    %v1041 = vsel %vm206, %v1009, %v1040
    %v1043 = vunpack.c.l.s4 1934713408
    %v1044 = vunpack.c.0.s8 %v1043
    %v1045 = vperm.slane %v1039, %v1044
    %v1047 = vunpack.c.l.s4 1934713408
    %v1048 = vunpack.c.0.s8 %v1047
    %v1049 = vperm.slane %v1041, %v1048
    %v1050 = vrot.slane %v1013, 4
    %v1051 = vsel %vm206, %v1050, %v1001
    %v1052 = vrot.slane %v1001, 4
    %v1053 = vsel %vm206, %v1013, %v1052
    %v1055 = vunpack.c.l.s4 1934713408
    %v1056 = vunpack.c.0.s8 %v1055
    %v1057 = vperm.slane %v1051, %v1056
    %v1059 = vunpack.c.l.s4 1934713408
    %v1060 = vunpack.c.0.s8 %v1059
    %v1061 = vperm.slane %v1053, %v1060
    %v1062 = vrot.slane %v1033, 4
    %v1063 = vsel %vm206, %v1062, %v1021
    %v1064 = vrot.slane %v1021, 4
    %v1065 = vsel %vm206, %v1033, %v1064
    %v1067 = vunpack.c.l.s4 1934713408
    %v1068 = vunpack.c.0.s8 %v1067
    %v1069 = vperm.slane %v1063, %v1068
    %v1071 = vunpack.c.l.s4 1934713408
    %v1072 = vunpack.c.0.s8 %v1071
    %v1073 = vperm.slane %v1065, %v1072
    %v1074 = vrot.slane %v1037, 4
    %v1075 = vsel %vm206, %v1074, %v1025
    %v1076 = vrot.slane %v1025, 4
    %v1077 = vsel %vm206, %v1037, %v1076
    %v1079 = vunpack.c.l.s4 1934713408
    %v1080 = vunpack.c.0.s8 %v1079
    %v1081 = vperm.slane %v1075, %v1080
    %v1083 = vunpack.c.l.s4 1934713408
    %v1084 = vunpack.c.0.s8 %v1083
    %v1085 = vperm.slane %v1077, %v1084
    %v1086 = vrot.slane %v1069, 4
    %v1087 = vsel %vm206, %v1086, %v1045
    %v1088 = vrot.slane %v1045, 4
    %v1089 = vsel %vm206, %v1069, %v1088
    %v1090 = vrot.slane %v1073, 4
    %v1091 = vsel %vm206, %v1090, %v1049
    %v1092 = vrot.slane %v1049, 4
    %v1093 = vsel %vm206, %v1073, %v1092
    %v1094 = vrot.slane %v1081, 4
    %v1095 = vsel %vm206, %v1094, %v1057
    %v1096 = vrot.slane %v1057, 4
    %v1097 = vsel %vm206, %v1081, %v1096
    %v1098 = vrot.slane %v1085, 4
    %v1099 = vsel %vm206, %v1098, %v1061
    %v1100 = vrot.slane %v1061, 4
    %v1101 = vsel %vm206, %v1085, %v1100
    %vm1102 = vcmask 64512
    %v1104 = vsel %vm1102, %v751, 0
    %v1107 = vsel %vm1102, %v863, 0
    %v1110 = vsel %vm1102, %v753, 0
    %v1113 = vsel %vm1102, %v865, 0
    %v1116 = vsel %vm1102, %v755, 0
    %v1119 = vsel %vm1102, %v867, 0
    %v1122 = vsel %vm1102, %v757, 0
    %v1125 = vsel %vm1102, %v869, 0
    %v1128 = vsel %vm1102, %v759, 0
    %v1131 = vsel %vm1102, %v871, 0
    %v1134 = vsel %vm1102, %v761, 0
    %v1137 = vsel %vm1102, %v873, 0
    %v1140 = vsel %vm1102, %v763, 0
    %v1143 = vsel %vm1102, %v875, 0
    %v1146 = vsel %vm1102, %v765, 0
    %v1149 = vsel %vm1102, %v877, 0
    %v1152 = vsel %vm1102, %v975, 0
    %v1155 = vsel %vm1102, %v1087, 0
    %v1158 = vsel %vm1102, %v977, 0
    %v1161 = vsel %vm1102, %v1089, 0
    %v1164 = vsel %vm1102, %v979, 0
    %v1167 = vsel %vm1102, %v1091, 0
    %v1170 = vsel %vm1102, %v981, 0
    %v1173 = vsel %vm1102, %v1093, 0
    %1175 = vmatpush.xpose.msra.mxu0 %v1173
    %1176 = vmatpush.xpose.msra.mxu0 %v1170
    %1177 = vmatpush.xpose.msra.mxu0 %v1167
    %1178 = vmatpush.xpose.msra.mxu0 %v1164
    %1179 = vmatpush.xpose.msra.mxu0 %v1161
    %1180 = vmatpush.xpose.msra.mxu0 %v1158
    %1181 = vmatpush.xpose.msra.mxu0 %v1155
    %1182 = vmatpush.xpose.msra.mxu0 %v1152
    %1183 = vmatpush.xpose.msra.mxu0 %v1149
    %1184 = vmatpush.xpose.msra.mxu0 %v1146
    %1185 = vmatpush.xpose.msra.mxu0 %v1143
    %1186 = vmatpush.xpose.msra.mxu0 %v1140
    %1187 = vmatpush.xpose.msra.mxu0 %v1137
    %1188 = vmatpush.xpose.msra.mxu0 %v1134
    %1189 = vmatpush.xpose.msra.mxu0 %v1131
    %1190 = vmatpush.xpose.msra.mxu0 %v1128
    %1191 = vmatmul.f32.gmra.mxu0 %v1104
    %v1192 = vpop.f32.mrf.mxu0
    %v1193 = vadd.f32 %v67, %v1192
    %1194 = vmatmul.f32.gmra.mxu0 %v1107
    %v1195 = vpop.f32.mrf.mxu0
    %v1196 = vadd.f32 %v68, %v1195
    %1197 = vmatmul.f32.gmra.mxu0 %v1110
    %v1198 = vpop.f32.mrf.mxu0
    %v1199 = vadd.f32 %v69, %v1198
    %1200 = vmatmul.f32.gmra.mxu0 %v1113
    %v1201 = vpop.f32.mrf.mxu0
    %v1202 = vadd.f32 %v70, %v1201
    %1203 = vmatmul.f32.gmra.mxu0 %v1116
    %v1204 = vpop.f32.mrf.mxu0
    %v1205 = vadd.f32 %v71, %v1204
    %1206 = vmatmul.f32.gmra.mxu0 %v1119
    %v1207 = vpop.f32.mrf.mxu0
    %v1208 = vadd.f32 %v72, %v1207
    %1209 = vmatmul.f32.gmra.mxu0 %v1122
    %v1210 = vpop.f32.mrf.mxu0
    %v1211 = vadd.f32 %v73, %v1210
    %1212 = vmatmul.f32.gmra.mxu0 %v1125
    %v1213 = vpop.f32.mrf.mxu0
    %v1214 = vadd.f32 %v74, %v1213
    %1215 = vdwg.mxu0
    %1216 = vmax.xlane.f32.xlu0 %v1193
    %v1217 = vpop.xlane.xlu0 %1216
    %1218 = vmax.xlane.f32.xlu0 %v1196
    %v1219 = vpop.xlane.xlu0 %1218
    %1220 = vmax.xlane.f32.xlu0 %v1199
    %v1221 = vpop.xlane.xlu0 %1220
    %1222 = vmax.xlane.f32.xlu0 %v1202
    %v1223 = vpop.xlane.xlu0 %1222
    %1224 = vmax.xlane.f32.xlu0 %v1205
    %v1225 = vpop.xlane.xlu0 %1224
    %1226 = vmax.xlane.f32.xlu0 %v1208
    %v1227 = vpop.xlane.xlu0 %1226
    %1228 = vmax.xlane.f32.xlu0 %v1211
    %v1229 = vpop.xlane.xlu0 %1228
    %1230 = vmax.xlane.f32.xlu0 %v1214
    %v1231 = vpop.xlane.xlu0 %1230
    %v1232 = vsub.f32 %v1193, %v1217
    %v1233 = vsub.f32 %v1196, %v1219
    %v1234 = vsub.f32 %v1199, %v1221
    %v1235 = vsub.f32 %v1202, %v1223
    %v1236 = vsub.f32 %v1205, %v1225
    %v1237 = vsub.f32 %v1208, %v1227
    %v1238 = vsub.f32 %v1211, %v1229
    %v1239 = vsub.f32 %v1214, %v1231
    %v1240 = vmul.f32 %v1232, 1.442695
    %v1241 = vpow.pop %v1240
    %v1242 = vmul.f32 %v1233, 1.442695
    %v1243 = vpow.pop %v1242
    %v1244 = vmul.f32 %v1234, 1.442695
    %v1245 = vpow.pop %v1244
    %v1246 = vmul.f32 %v1235, 1.442695
    %v1247 = vpow.pop %v1246
    %v1248 = vmul.f32 %v1236, 1.442695
    %v1249 = vpow.pop %v1248
    %v1250 = vmul.f32 %v1237, 1.442695
    %v1251 = vpow.pop %v1250
    %v1252 = vmul.f32 %v1238, 1.442695
    %v1253 = vpow.pop %v1252
    %v1254 = vmul.f32 %v1239, 1.442695
    %v1255 = vpow.pop %v1254
    %1256 = vadd.xlane.f32.xlu0 %v1241
    %v1257 = vpop.xlane.xlu0 %1256
    %1258 = vadd.xlane.f32.xlu0 %v1243
    %v1259 = vpop.xlane.xlu0 %1258
    %1260 = vadd.xlane.f32.xlu0 %v1245
    %v1261 = vpop.xlane.xlu0 %1260
    %1262 = vadd.xlane.f32.xlu0 %v1247
    %v1263 = vpop.xlane.xlu0 %1262
    %1264 = vadd.xlane.f32.xlu0 %v1249
    %v1265 = vpop.xlane.xlu0 %1264
    %1266 = vadd.xlane.f32.xlu0 %v1251
    %v1267 = vpop.xlane.xlu0 %1266
    %1268 = vadd.xlane.f32.xlu0 %v1253
    %v1269 = vpop.xlane.xlu0 %1268
    %1270 = vadd.xlane.f32.xlu0 %v1255
    %v1271 = vpop.xlane.xlu0 %1270
    %v1272 = vrcp.pop %v1257
    %v1273 = vrcp.pop %v1259
    %v1274 = vrcp.pop %v1261
    %v1275 = vrcp.pop %v1263
    %v1276 = vrcp.pop %v1265
    %v1277 = vrcp.pop %v1267
    %v1278 = vrcp.pop %v1269
    %v1279 = vrcp.pop %v1271
    %v1280 = vmul.f32 %v1241, %v1272
    %v1281 = vmul.f32 %v1243, %v1273
    %v1282 = vmul.f32 %v1245, %v1274
    %v1283 = vmul.f32 %v1247, %v1275
    %v1284 = vmul.f32 %v1249, %v1276
    %v1285 = vmul.f32 %v1251, %v1277
    %v1286 = vmul.f32 %v1253, %v1278
    %v1287 = vmul.f32 %v1255, %v1279
    %1288 = vmatpush.msra.mxu0 %v1101
    %1289 = vmatpush.msra.mxu0 %v989
    %1290 = vmatpush.msra.mxu0 %v1099
    %1291 = vmatpush.msra.mxu0 %v987
    %1292 = vmatpush.msra.mxu0 %v1097
    %1293 = vmatpush.msra.mxu0 %v985
    %1294 = vmatpush.msra.mxu0 %v1095
    %1295 = vmatpush.msra.mxu0 %v983
    %1296 = vmatpush.msra.mxu0 %v1093
    %1297 = vmatpush.msra.mxu0 %v981
    %1298 = vmatpush.msra.mxu0 %v1091
    %1299 = vmatpush.msra.mxu0 %v979
    %1300 = vmatpush.msra.mxu0 %v1089
    %1301 = vmatpush.msra.mxu0 %v977
    %1302 = vmatpush.msra.mxu0 %v1087
    %1303 = vmatpush.msra.mxu0 %v975
    %1304 = vmatmul.f32.gmra.mxu0 %v1280
    %v1305 = vpop.f32.mrf.mxu0
    %v1306 = vadd.f32 0.0, %v1305
    %1307 = vmatmul.f32.gmra.mxu0 %v1281
    %v1308 = vpop.f32.mrf.mxu0
    %v1309 = vadd.f32 0.0, %v1308
    %1310 = vmatmul.f32.gmra.mxu0 %v1282
    %v1311 = vpop.f32.mrf.mxu0
    %v1312 = vadd.f32 0.0, %v1311
    %1313 = vmatmul.f32.gmra.mxu0 %v1283
    %v1314 = vpop.f32.mrf.mxu0
    %v1315 = vadd.f32 0.0, %v1314
    %1316 = vmatmul.f32.gmra.mxu0 %v1284
    %v1317 = vpop.f32.mrf.mxu0
    %v1318 = vadd.f32 0.0, %v1317
    %1319 = vmatmul.f32.gmra.mxu0 %v1285
    %v1320 = vpop.f32.mrf.mxu0
    %v1321 = vadd.f32 0.0, %v1320
    %1322 = vmatmul.f32.gmra.mxu0 %v1286
    %v1323 = vpop.f32.mrf.mxu0
    %v1324 = vadd.f32 0.0, %v1323
    %1325 = vmatmul.f32.gmra.mxu0 %v1287
    %v1326 = vpop.f32.mrf.mxu0
    %v1327 = vadd.f32 0.0, %v1326
    %1328 = vdwg.mxu0
    %v1329 = vrot.slane %v1318, 4
    %v1330 = vsel %vm206, %v1329, %v1306
    %v1331 = vrot.slane %v1306, 4
    %v1332 = vsel %vm206, %v1318, %v1331
    %v1334 = vunpack.c.l.s4 1983009808
    %v1335 = vunpack.c.0.s8 %v1334
    %v1336 = vperm.slane %v1330, %v1335
    %v1338 = vunpack.c.l.s4 1983009808
    %v1339 = vunpack.c.0.s8 %v1338
    %v1340 = vperm.slane %v1332, %v1339
    %v1341 = vrot.slane %v1324, 4
    %v1342 = vsel %vm206, %v1341, %v1312
    %v1343 = vrot.slane %v1312, 4
    %v1344 = vsel %vm206, %v1324, %v1343
    %v1346 = vunpack.c.l.s4 1983009808
    %v1347 = vunpack.c.0.s8 %v1346
    %v1348 = vperm.slane %v1342, %v1347
    %v1350 = vunpack.c.l.s4 1983009808
    %v1351 = vunpack.c.0.s8 %v1350
    %v1352 = vperm.slane %v1344, %v1351
    %v1353 = vrot.slane %v1348, 4
    %v1354 = vsel %vm206, %v1353, %v1336
    %v1355 = vrot.slane %v1336, 4
    %v1356 = vsel %vm206, %v1348, %v1355
    %v1358 = vunpack.c.l.s4 1934713408
    %v1359 = vunpack.c.0.s8 %v1358
    %v1360 = vperm.slane %v1354, %v1359
    %v1362 = vunpack.c.l.s4 1934713408
    %v1363 = vunpack.c.0.s8 %v1362
    %v1364 = vperm.slane %v1356, %v1363
    %v1365 = vrot.slane %v1352, 4
    %v1366 = vsel %vm206, %v1365, %v1340
    %v1367 = vrot.slane %v1340, 4
    %v1368 = vsel %vm206, %v1352, %v1367
    %v1370 = vunpack.c.l.s4 1934713408
    %v1371 = vunpack.c.0.s8 %v1370
    %v1372 = vperm.slane %v1366, %v1371
    %v1374 = vunpack.c.l.s4 1934713408
    %v1375 = vunpack.c.0.s8 %v1374
    %v1376 = vperm.slane %v1368, %v1375
    %v1377 = vrot.slane %v1360, 4
    %v1378 = vsel %vm206, 0.0, %v1377
    %v1379 = vrot.slane %v1364, 4
    %v1380 = vsel %vm206, 0.0, %v1379
    %v1381 = vrot.slane %v1372, 4
    %v1382 = vsel %vm206, 0.0, %v1381
    %v1383 = vrot.slane %v1376, 4
    %v1384 = vsel %vm206, 0.0, %v1383
    %v1385 = vrot.slane %v1321, 4
    %v1386 = vsel %vm206, %v1385, %v1309
    %v1387 = vrot.slane %v1309, 4
    %v1388 = vsel %vm206, %v1321, %v1387
    %v1390 = vunpack.c.l.s4 1983009808
    %v1391 = vunpack.c.0.s8 %v1390
    %v1392 = vperm.slane %v1386, %v1391
    %v1394 = vunpack.c.l.s4 1983009808
    %v1395 = vunpack.c.0.s8 %v1394
    %v1396 = vperm.slane %v1388, %v1395
    %v1397 = vrot.slane %v1327, 4
    %v1398 = vsel %vm206, %v1397, %v1315
    %v1399 = vrot.slane %v1315, 4
    %v1400 = vsel %vm206, %v1327, %v1399
    %v1402 = vunpack.c.l.s4 1983009808
    %v1403 = vunpack.c.0.s8 %v1402
    %v1404 = vperm.slane %v1398, %v1403
    %v1406 = vunpack.c.l.s4 1983009808
    %v1407 = vunpack.c.0.s8 %v1406
    %v1408 = vperm.slane %v1400, %v1407
    %v1409 = vrot.slane %v1404, 4
    %v1410 = vsel %vm206, %v1409, %v1392
    %v1411 = vrot.slane %v1392, 4
    %v1412 = vsel %vm206, %v1404, %v1411
    %v1414 = vunpack.c.l.s4 1934713408
    %v1415 = vunpack.c.0.s8 %v1414
    %v1416 = vperm.slane %v1410, %v1415
    %v1418 = vunpack.c.l.s4 1934713408
    %v1419 = vunpack.c.0.s8 %v1418
    %v1420 = vperm.slane %v1412, %v1419
    %v1421 = vrot.slane %v1408, 4
    %v1422 = vsel %vm206, %v1421, %v1396
    %v1423 = vrot.slane %v1396, 4
    %v1424 = vsel %vm206, %v1408, %v1423
    %v1426 = vunpack.c.l.s4 1934713408
    %v1427 = vunpack.c.0.s8 %v1426
    %v1428 = vperm.slane %v1422, %v1427
    %v1430 = vunpack.c.l.s4 1934713408
    %v1431 = vunpack.c.0.s8 %v1430
    %v1432 = vperm.slane %v1424, %v1431
    %v1433 = vrot.slane %v1416, 4
    %v1434 = vsel %vm206, 0.0, %v1433
    %v1435 = vrot.slane %v1420, 4
    %v1436 = vsel %vm206, 0.0, %v1435
    %v1437 = vrot.slane %v1428, 4
    %v1438 = vsel %vm206, 0.0, %v1437
    %v1439 = vrot.slane %v1432, 4
    %v1440 = vsel %vm206, 0.0, %v1439
    %v1441 = vsel %vm206, %v1379, %v1360
    %v1443 = vunpack.c.l.s4 1983009808
    %v1444 = vunpack.c.0.s8 %v1443
    %v1445 = vperm.slane %v1441, %v1444
    %v1446 = vrot.slane %v1380, 4
    %v1447 = vsel %vm206, %v1446, %v1378
    %v1449 = vunpack.c.l.s4 1983009808
    %v1450 = vunpack.c.0.s8 %v1449
    %v1451 = vperm.slane %v1447, %v1450
    %v1452 = vsel %vm206, %v1383, %v1372
    %v1454 = vunpack.c.l.s4 1983009808
    %v1455 = vunpack.c.0.s8 %v1454
    %v1456 = vperm.slane %v1452, %v1455
    %v1457 = vrot.slane %v1384, 4
    %v1458 = vsel %vm206, %v1457, %v1382
    %v1460 = vunpack.c.l.s4 1983009808
    %v1461 = vunpack.c.0.s8 %v1460
    %v1462 = vperm.slane %v1458, %v1461
    %v1463 = vrot.slane %v1451, 4
    %v1464 = vsel %vm206, %v1463, %v1445
    %v1465 = vrot.slane %v1445, 4
    %v1466 = vsel %vm206, %v1451, %v1465
    %v1468 = vunpack.c.l.s4 1934713408
    %v1469 = vunpack.c.0.s8 %v1468
    %v1470 = vperm.slane %v1464, %v1469
    %v1472 = vunpack.c.l.s4 1934713408
    %v1473 = vunpack.c.0.s8 %v1472
    %v1474 = vperm.slane %v1466, %v1473
    %v1475 = vrot.slane %v1462, 4
    %v1476 = vsel %vm206, %v1475, %v1456
    %v1477 = vrot.slane %v1456, 4
    %v1478 = vsel %vm206, %v1462, %v1477
    %v1480 = vunpack.c.l.s4 1934713408
    %v1481 = vunpack.c.0.s8 %v1480
    %v1482 = vperm.slane %v1476, %v1481
    %v1484 = vunpack.c.l.s4 1934713408
    %v1485 = vunpack.c.0.s8 %v1484
    %v1486 = vperm.slane %v1478, %v1485
    %v1487 = vrot.slane %v1482, 4
    %v1488 = vsel %vm206, %v1487, %v1470
    %v1489 = vrot.slane %v1470, 4
    %v1490 = vsel %vm206, %v1482, %v1489
    %v1491 = vrot.slane %v1486, 4
    %v1492 = vsel %vm206, %v1491, %v1474
    %v1493 = vrot.slane %v1474, 4
    %v1494 = vsel %vm206, %v1486, %v1493
    %v1495 = vsel %vm206, %v1435, %v1416
    %v1497 = vunpack.c.l.s4 1983009808
    %v1498 = vunpack.c.0.s8 %v1497
    %v1499 = vperm.slane %v1495, %v1498
    %v1500 = vrot.slane %v1436, 4
    %v1501 = vsel %vm206, %v1500, %v1434
    %v1503 = vunpack.c.l.s4 1983009808
    %v1504 = vunpack.c.0.s8 %v1503
    %v1505 = vperm.slane %v1501, %v1504
    %v1506 = vsel %vm206, %v1439, %v1428
    %v1508 = vunpack.c.l.s4 1983009808
    %v1509 = vunpack.c.0.s8 %v1508
    %v1510 = vperm.slane %v1506, %v1509
    %v1511 = vrot.slane %v1440, 4
    %v1512 = vsel %vm206, %v1511, %v1438
    %v1514 = vunpack.c.l.s4 1983009808
    %v1515 = vunpack.c.0.s8 %v1514
    %v1516 = vperm.slane %v1512, %v1515
    %v1517 = vrot.slane %v1505, 4
    %v1518 = vsel %vm206, %v1517, %v1499
    %v1519 = vrot.slane %v1499, 4
    %v1520 = vsel %vm206, %v1505, %v1519
    %v1522 = vunpack.c.l.s4 1934713408
    %v1523 = vunpack.c.0.s8 %v1522
    %v1524 = vperm.slane %v1518, %v1523
    %v1526 = vunpack.c.l.s4 1934713408
    %v1527 = vunpack.c.0.s8 %v1526
    %v1528 = vperm.slane %v1520, %v1527
    %v1529 = vrot.slane %v1516, 4
    %v1530 = vsel %vm206, %v1529, %v1510
    %v1531 = vrot.slane %v1510, 4
    %v1532 = vsel %vm206, %v1516, %v1531
    %v1534 = vunpack.c.l.s4 1934713408
    %v1535 = vunpack.c.0.s8 %v1534
    %v1536 = vperm.slane %v1530, %v1535
    %v1538 = vunpack.c.l.s4 1934713408
    %v1539 = vunpack.c.0.s8 %v1538
    %v1540 = vperm.slane %v1532, %v1539
    %v1541 = vrot.slane %v1536, 4
    %v1542 = vsel %vm206, %v1541, %v1524
    %v1543 = vrot.slane %v1524, 4
    %v1544 = vsel %vm206, %v1536, %v1543
    %v1545 = vrot.slane %v1540, 4
    %v1546 = vsel %vm206, %v1545, %v1528
    %v1547 = vrot.slane %v1528, 4
    %v1548 = vsel %vm206, %v1540, %v1547
    %1551 = vrot.lane.b32.xlu0 %v1490, 8
    %v1552 = vpop.permute.xlu0 %1551
    %1553 = vrot.lane.b32.xlu0 %v1544, 8
    %v1554 = vpop.permute.xlu0 %1553
    %1559 = vrot.lane.b32.xlu0 %v1492, 16
    %v1560 = vpop.permute.xlu0 %1559
    %1561 = vrot.lane.b32.xlu0 %v1546, 16
    %v1562 = vpop.permute.xlu0 %1561
    %1567 = vrot.lane.b32.xlu0 %v1494, 24
    %v1568 = vpop.permute.xlu0 %1567
    %1569 = vrot.lane.b32.xlu0 %v1548, 24
    %v1570 = vpop.permute.xlu0 %1569
    %v1573 = vsel %vm1102, %v1488, %v1552
    %v1574 = vsel %vm1102, %v1542, %v1554
    %vm1575 = vcmask 130048
    %v1576 = vsel %vm1575, %v1573, %v1560
    %v1577 = vsel %vm1575, %v1574, %v1562
    %vm1578 = vcmask 195584
    %v1579 = vsel %vm1578, %v1576, %v1568
    %v1580 = vsel %vm1578, %v1577, %v1570
    %v1581 = vperm.slane %v63, 0
    %v1583 = vsel %vm83, %v1579, 0
    %v1586 = vsel %vm83, %v1580, 0
    %1588 = vmatpush.msra.mxu0 0.0
    %1589 = vmatpush.msra.mxu0 0.0
    %1590 = vmatpush.msra.mxu0 0.0
    %1591 = vmatpush.msra.mxu0 0.0
    %1592 = vmatpush.msra.mxu0 0.0
    %1593 = vmatpush.msra.mxu0 0.0
    %1594 = vmatpush.msra.mxu0 0.0
    %1595 = vmatpush.msra.mxu0 0.0
    %1596 = vmatpush.msra.mxu0 0.0
    %1597 = vmatpush.msra.mxu0 0.0
    %1598 = vmatpush.msra.mxu0 0.0
    %1599 = vmatpush.msra.mxu0 0.0
    %1600 = vmatpush.msra.mxu0 %v46
    %1601 = vmatpush.msra.mxu0 %v45
    %1602 = vmatpush.msra.mxu0 %v44
    %1603 = vmatpush.msra.mxu0 %v43
    %1604 = vmatmul.f32.gmra.mxu0 %v1583
    %v1605 = vpop.f32.mrf.mxu0
    %v1606 = vadd.f32 %v1581, %v1605
    %1607 = vmatmul.f32.gmra.mxu0 %v1586
    %v1608 = vpop.f32.mrf.mxu0
    %v1609 = vadd.f32 %v1581, %v1608
    %1610 = vdwg.mxu0
    %v1611 = vadd.f32 %v1606, %v27
    %v1612 = vadd.f32 %v1609, %v28
    %v1614 = vsel %vm83, %v29, 0
    %v1617 = vsel %vm83, %v30, 0
    %1619 = vmatpush.msra.mxu0 0.0
    %1620 = vmatpush.msra.mxu0 0.0
    %1621 = vmatpush.msra.mxu0 0.0
    %1622 = vmatpush.msra.mxu0 0.0
    %1623 = vmatpush.msra.mxu0 0.0
    %1624 = vmatpush.msra.mxu0 0.0
    %1625 = vmatpush.msra.mxu0 0.0
    %1626 = vmatpush.msra.mxu0 0.0
    %1627 = vmatpush.msra.mxu0 0.0
    %1628 = vmatpush.msra.mxu0 0.0
    %1629 = vmatpush.msra.mxu0 0.0
    %1630 = vmatpush.msra.mxu0 0.0
    %1631 = vmatpush.msra.mxu0 %v38
    %1632 = vmatpush.msra.mxu0 %v37
    %1633 = vmatpush.msra.mxu0 %v36
    %1634 = vmatpush.msra.mxu0 %v35
    %1635 = vmatmul.f32.gmra.mxu0 %v1614
    %v1636 = vpop.f32.mrf.mxu0
    %v1637 = vadd.f32 0.0, %v1636
    %1638 = vmatmul.f32.gmra.mxu0 %v1617
    %v1639 = vpop.f32.mrf.mxu0
    %v1640 = vadd.f32 0.0, %v1639
    %1641 = vdwg.mxu0
    %1644 = vrot.lane.b32.xlu0 %v1637, 120
    %v1645 = vpop.permute.xlu0 %1644
    %1646 = vrot.lane.b32.xlu0 %v1640, 120
    %v1647 = vpop.permute.xlu0 %1646
    %1650 = vrot.lane.b32.xlu0 %v1637, 112
    %v1651 = vpop.permute.xlu0 %1650
    %1652 = vrot.lane.b32.xlu0 %v1640, 112
    %v1653 = vpop.permute.xlu0 %1652
    %1656 = vrot.lane.b32.xlu0 %v1637, 104
    %v1657 = vpop.permute.xlu0 %1656
    %1658 = vrot.lane.b32.xlu0 %v1640, 104
    %v1659 = vpop.permute.xlu0 %1658
    %1662 = vrot.lane.b32.xlu0 %v1637, 96
    %v1663 = vpop.permute.xlu0 %1662
    %1664 = vrot.lane.b32.xlu0 %v1640, 96
    %v1665 = vpop.permute.xlu0 %1664
    %1668 = vrot.lane.b32.xlu0 %v1637, 88
    %v1669 = vpop.permute.xlu0 %1668
    %1670 = vrot.lane.b32.xlu0 %v1640, 88
    %v1671 = vpop.permute.xlu0 %1670
    %1674 = vrot.lane.b32.xlu0 %v1637, 80
    %v1675 = vpop.permute.xlu0 %1674
    %1676 = vrot.lane.b32.xlu0 %v1640, 80
    %v1677 = vpop.permute.xlu0 %1676
    %1680 = vrot.lane.b32.xlu0 %v1637, 72
    %v1681 = vpop.permute.xlu0 %1680
    %1682 = vrot.lane.b32.xlu0 %v1640, 72
    %v1683 = vpop.permute.xlu0 %1682
    %1686 = vrot.lane.b32.xlu0 %v1637, 64
    %v1687 = vpop.permute.xlu0 %1686
    %1688 = vrot.lane.b32.xlu0 %v1640, 64
    %v1689 = vpop.permute.xlu0 %1688
    %1692 = vrot.lane.b32.xlu0 %v1637, 56
    %v1693 = vpop.permute.xlu0 %1692
    %1694 = vrot.lane.b32.xlu0 %v1640, 56
    %v1695 = vpop.permute.xlu0 %1694
    %1698 = vrot.lane.b32.xlu0 %v1637, 48
    %v1699 = vpop.permute.xlu0 %1698
    %1700 = vrot.lane.b32.xlu0 %v1640, 48
    %v1701 = vpop.permute.xlu0 %1700
    %1704 = vrot.lane.b32.xlu0 %v1637, 40
    %v1705 = vpop.permute.xlu0 %1704
    %1706 = vrot.lane.b32.xlu0 %v1640, 40
    %v1707 = vpop.permute.xlu0 %1706
    %1710 = vrot.lane.b32.xlu0 %v1637, 32
    %v1711 = vpop.permute.xlu0 %1710
    %1712 = vrot.lane.b32.xlu0 %v1640, 32
    %v1713 = vpop.permute.xlu0 %1712
    %1716 = vrot.lane.b32.xlu0 %v1637, 24
    %v1717 = vpop.permute.xlu0 %1716
    %1718 = vrot.lane.b32.xlu0 %v1640, 24
    %v1719 = vpop.permute.xlu0 %1718
    %1722 = vrot.lane.b32.xlu0 %v1637, 16
    %v1723 = vpop.permute.xlu0 %1722
    %1724 = vrot.lane.b32.xlu0 %v1640, 16
    %v1725 = vpop.permute.xlu0 %1724
    %1728 = vrot.lane.b32.xlu0 %v1637, 8
    %v1729 = vpop.permute.xlu0 %1728
    %1730 = vrot.lane.b32.xlu0 %v1640, 8
    %v1731 = vpop.permute.xlu0 %1730
    %v1734 = vrot.slane %v1651, 4
    %v1735 = vsel %vm206, %v1734, %v1637
    %v1736 = vrot.slane %v1637, 4
    %v1737 = vsel %vm206, %v1651, %v1736
    %v1739 = vunpack.c.l.s4 1983009808
    %v1740 = vunpack.c.0.s8 %v1739
    %v1741 = vperm.slane %v1735, %v1740
    %v1743 = vunpack.c.l.s4 1983009808
    %v1744 = vunpack.c.0.s8 %v1743
    %v1745 = vperm.slane %v1737, %v1744
    %v1746 = vrot.slane %v1657, 4
    %v1747 = vsel %vm206, %v1746, %v1645
    %v1748 = vrot.slane %v1645, 4
    %v1749 = vsel %vm206, %v1657, %v1748
    %v1751 = vunpack.c.l.s4 1983009808
    %v1752 = vunpack.c.0.s8 %v1751
    %v1753 = vperm.slane %v1747, %v1752
    %v1755 = vunpack.c.l.s4 1983009808
    %v1756 = vunpack.c.0.s8 %v1755
    %v1757 = vperm.slane %v1749, %v1756
    %v1758 = vrot.slane %v1675, 4
    %v1759 = vsel %vm206, %v1758, %v1663
    %v1760 = vrot.slane %v1663, 4
    %v1761 = vsel %vm206, %v1675, %v1760
    %v1763 = vunpack.c.l.s4 1983009808
    %v1764 = vunpack.c.0.s8 %v1763
    %v1765 = vperm.slane %v1759, %v1764
    %v1767 = vunpack.c.l.s4 1983009808
    %v1768 = vunpack.c.0.s8 %v1767
    %v1769 = vperm.slane %v1761, %v1768
    %v1770 = vrot.slane %v1681, 4
    %v1771 = vsel %vm206, %v1770, %v1669
    %v1772 = vrot.slane %v1669, 4
    %v1773 = vsel %vm206, %v1681, %v1772
    %v1775 = vunpack.c.l.s4 1983009808
    %v1776 = vunpack.c.0.s8 %v1775
    %v1777 = vperm.slane %v1771, %v1776
    %v1779 = vunpack.c.l.s4 1983009808
    %v1780 = vunpack.c.0.s8 %v1779
    %v1781 = vperm.slane %v1773, %v1780
    %v1782 = vrot.slane %v1753, 4
    %v1783 = vsel %vm206, %v1782, %v1741
    %v1784 = vrot.slane %v1741, 4
    %v1785 = vsel %vm206, %v1753, %v1784
    %v1787 = vunpack.c.l.s4 1934713408
    %v1788 = vunpack.c.0.s8 %v1787
    %v1789 = vperm.slane %v1783, %v1788
    %v1791 = vunpack.c.l.s4 1934713408
    %v1792 = vunpack.c.0.s8 %v1791
    %v1793 = vperm.slane %v1785, %v1792
    %v1794 = vrot.slane %v1757, 4
    %v1795 = vsel %vm206, %v1794, %v1745
    %v1796 = vrot.slane %v1745, 4
    %v1797 = vsel %vm206, %v1757, %v1796
    %v1799 = vunpack.c.l.s4 1934713408
    %v1800 = vunpack.c.0.s8 %v1799
    %v1801 = vperm.slane %v1795, %v1800
    %v1803 = vunpack.c.l.s4 1934713408
    %v1804 = vunpack.c.0.s8 %v1803
    %v1805 = vperm.slane %v1797, %v1804
    %v1806 = vrot.slane %v1777, 4
    %v1807 = vsel %vm206, %v1806, %v1765
    %v1808 = vrot.slane %v1765, 4
    %v1809 = vsel %vm206, %v1777, %v1808
    %v1811 = vunpack.c.l.s4 1934713408
    %v1812 = vunpack.c.0.s8 %v1811
    %v1813 = vperm.slane %v1807, %v1812
    %v1815 = vunpack.c.l.s4 1934713408
    %v1816 = vunpack.c.0.s8 %v1815
    %v1817 = vperm.slane %v1809, %v1816
    %v1818 = vrot.slane %v1781, 4
    %v1819 = vsel %vm206, %v1818, %v1769
    %v1820 = vrot.slane %v1769, 4
    %v1821 = vsel %vm206, %v1781, %v1820
    %v1823 = vunpack.c.l.s4 1934713408
    %v1824 = vunpack.c.0.s8 %v1823
    %v1825 = vperm.slane %v1819, %v1824
    %v1827 = vunpack.c.l.s4 1934713408
    %v1828 = vunpack.c.0.s8 %v1827
    %v1829 = vperm.slane %v1821, %v1828
    %v1830 = vrot.slane %v1813, 4
    %v1831 = vsel %vm206, %v1830, %v1789
    %v1832 = vrot.slane %v1789, 4
    %v1833 = vsel %vm206, %v1813, %v1832
    %v1834 = vrot.slane %v1817, 4
    %v1835 = vsel %vm206, %v1834, %v1793
    %v1836 = vrot.slane %v1793, 4
    %v1837 = vsel %vm206, %v1817, %v1836
    %v1838 = vrot.slane %v1825, 4
    %v1839 = vsel %vm206, %v1838, %v1801
    %v1840 = vrot.slane %v1801, 4
    %v1841 = vsel %vm206, %v1825, %v1840
    %v1842 = vrot.slane %v1829, 4
    %v1843 = vsel %vm206, %v1842, %v1805
    %v1844 = vrot.slane %v1805, 4
    %v1845 = vsel %vm206, %v1829, %v1844
    %v1846 = vrot.slane %v1699, 4
    %v1847 = vsel %vm206, %v1846, %v1687
    %v1848 = vrot.slane %v1687, 4
    %v1849 = vsel %vm206, %v1699, %v1848
    %v1851 = vunpack.c.l.s4 1983009808
    %v1852 = vunpack.c.0.s8 %v1851
    %v1853 = vperm.slane %v1847, %v1852
    %v1855 = vunpack.c.l.s4 1983009808
    %v1856 = vunpack.c.0.s8 %v1855
    %v1857 = vperm.slane %v1849, %v1856
    %v1858 = vrot.slane %v1705, 4
    %v1859 = vsel %vm206, %v1858, %v1693
    %v1860 = vrot.slane %v1693, 4
    %v1861 = vsel %vm206, %v1705, %v1860
    %v1863 = vunpack.c.l.s4 1983009808
    %v1864 = vunpack.c.0.s8 %v1863
    %v1865 = vperm.slane %v1859, %v1864
    %v1867 = vunpack.c.l.s4 1983009808
    %v1868 = vunpack.c.0.s8 %v1867
    %v1869 = vperm.slane %v1861, %v1868
    %v1870 = vrot.slane %v1723, 4
    %v1871 = vsel %vm206, %v1870, %v1711
    %v1872 = vrot.slane %v1711, 4
    %v1873 = vsel %vm206, %v1723, %v1872
    %v1875 = vunpack.c.l.s4 1983009808
    %v1876 = vunpack.c.0.s8 %v1875
    %v1877 = vperm.slane %v1871, %v1876
    %v1879 = vunpack.c.l.s4 1983009808
    %v1880 = vunpack.c.0.s8 %v1879
    %v1881 = vperm.slane %v1873, %v1880
    %v1882 = vrot.slane %v1729, 4
    %v1883 = vsel %vm206, %v1882, %v1717
    %v1884 = vrot.slane %v1717, 4
    %v1885 = vsel %vm206, %v1729, %v1884
    %v1887 = vunpack.c.l.s4 1983009808
    %v1888 = vunpack.c.0.s8 %v1887
    %v1889 = vperm.slane %v1883, %v1888
    %v1891 = vunpack.c.l.s4 1983009808
    %v1892 = vunpack.c.0.s8 %v1891
    %v1893 = vperm.slane %v1885, %v1892
    %v1894 = vrot.slane %v1865, 4
    %v1895 = vsel %vm206, %v1894, %v1853
    %v1896 = vrot.slane %v1853, 4
    %v1897 = vsel %vm206, %v1865, %v1896
    %v1899 = vunpack.c.l.s4 1934713408
    %v1900 = vunpack.c.0.s8 %v1899
    %v1901 = vperm.slane %v1895, %v1900
    %v1903 = vunpack.c.l.s4 1934713408
    %v1904 = vunpack.c.0.s8 %v1903
    %v1905 = vperm.slane %v1897, %v1904
    %v1906 = vrot.slane %v1869, 4
    %v1907 = vsel %vm206, %v1906, %v1857
    %v1908 = vrot.slane %v1857, 4
    %v1909 = vsel %vm206, %v1869, %v1908
    %v1911 = vunpack.c.l.s4 1934713408
    %v1912 = vunpack.c.0.s8 %v1911
    %v1913 = vperm.slane %v1907, %v1912
    %v1915 = vunpack.c.l.s4 1934713408
    %v1916 = vunpack.c.0.s8 %v1915
    %v1917 = vperm.slane %v1909, %v1916
    %v1918 = vrot.slane %v1889, 4
    %v1919 = vsel %vm206, %v1918, %v1877
    %v1920 = vrot.slane %v1877, 4
    %v1921 = vsel %vm206, %v1889, %v1920
    %v1923 = vunpack.c.l.s4 1934713408
    %v1924 = vunpack.c.0.s8 %v1923
    %v1925 = vperm.slane %v1919, %v1924
    %v1927 = vunpack.c.l.s4 1934713408
    %v1928 = vunpack.c.0.s8 %v1927
    %v1929 = vperm.slane %v1921, %v1928
    %v1930 = vrot.slane %v1893, 4
    %v1931 = vsel %vm206, %v1930, %v1881
    %v1932 = vrot.slane %v1881, 4
    %v1933 = vsel %vm206, %v1893, %v1932
    %v1935 = vunpack.c.l.s4 1934713408
    %v1936 = vunpack.c.0.s8 %v1935
    %v1937 = vperm.slane %v1931, %v1936
    %v1939 = vunpack.c.l.s4 1934713408
    %v1940 = vunpack.c.0.s8 %v1939
    %v1941 = vperm.slane %v1933, %v1940
    %v1942 = vrot.slane %v1925, 4
    %v1943 = vsel %vm206, %v1942, %v1901
    %v1944 = vrot.slane %v1901, 4
    %v1945 = vsel %vm206, %v1925, %v1944
    %v1946 = vrot.slane %v1929, 4
    %v1947 = vsel %vm206, %v1946, %v1905
    %v1948 = vrot.slane %v1905, 4
    %v1949 = vsel %vm206, %v1929, %v1948
    %v1950 = vrot.slane %v1937, 4
    %v1951 = vsel %vm206, %v1950, %v1913
    %v1952 = vrot.slane %v1913, 4
    %v1953 = vsel %vm206, %v1937, %v1952
    %v1954 = vrot.slane %v1941, 4
    %v1955 = vsel %vm206, %v1954, %v1917
    %v1956 = vrot.slane %v1917, 4
    %v1957 = vsel %vm206, %v1941, %v1956
    %v1958 = vrot.slane %v1653, 4
    %v1959 = vsel %vm206, %v1958, %v1640
    %v1960 = vrot.slane %v1640, 4
    %v1961 = vsel %vm206, %v1653, %v1960
    %v1963 = vunpack.c.l.s4 1983009808
    %v1964 = vunpack.c.0.s8 %v1963
    %v1965 = vperm.slane %v1959, %v1964
    %v1967 = vunpack.c.l.s4 1983009808
    %v1968 = vunpack.c.0.s8 %v1967
    %v1969 = vperm.slane %v1961, %v1968
    %v1970 = vrot.slane %v1659, 4
    %v1971 = vsel %vm206, %v1970, %v1647
    %v1972 = vrot.slane %v1647, 4
    %v1973 = vsel %vm206, %v1659, %v1972
    %v1975 = vunpack.c.l.s4 1983009808
    %v1976 = vunpack.c.0.s8 %v1975
    %v1977 = vperm.slane %v1971, %v1976
    %v1979 = vunpack.c.l.s4 1983009808
    %v1980 = vunpack.c.0.s8 %v1979
    %v1981 = vperm.slane %v1973, %v1980
    %v1982 = vrot.slane %v1677, 4
    %v1983 = vsel %vm206, %v1982, %v1665
    %v1984 = vrot.slane %v1665, 4
    %v1985 = vsel %vm206, %v1677, %v1984
    %v1987 = vunpack.c.l.s4 1983009808
    %v1988 = vunpack.c.0.s8 %v1987
    %v1989 = vperm.slane %v1983, %v1988
    %v1991 = vunpack.c.l.s4 1983009808
    %v1992 = vunpack.c.0.s8 %v1991
    %v1993 = vperm.slane %v1985, %v1992
    %v1994 = vrot.slane %v1683, 4
    %v1995 = vsel %vm206, %v1994, %v1671
    %v1996 = vrot.slane %v1671, 4
    %v1997 = vsel %vm206, %v1683, %v1996
    %v1999 = vunpack.c.l.s4 1983009808
    %v2000 = vunpack.c.0.s8 %v1999
    %v2001 = vperm.slane %v1995, %v2000
    %v2003 = vunpack.c.l.s4 1983009808
    %v2004 = vunpack.c.0.s8 %v2003
    %v2005 = vperm.slane %v1997, %v2004
    %v2006 = vrot.slane %v1977, 4
    %v2007 = vsel %vm206, %v2006, %v1965
    %v2008 = vrot.slane %v1965, 4
    %v2009 = vsel %vm206, %v1977, %v2008
    %v2011 = vunpack.c.l.s4 1934713408
    %v2012 = vunpack.c.0.s8 %v2011
    %v2013 = vperm.slane %v2007, %v2012
    %v2015 = vunpack.c.l.s4 1934713408
    %v2016 = vunpack.c.0.s8 %v2015
    %v2017 = vperm.slane %v2009, %v2016
    %v2018 = vrot.slane %v1981, 4
    %v2019 = vsel %vm206, %v2018, %v1969
    %v2020 = vrot.slane %v1969, 4
    %v2021 = vsel %vm206, %v1981, %v2020
    %v2023 = vunpack.c.l.s4 1934713408
    %v2024 = vunpack.c.0.s8 %v2023
    %v2025 = vperm.slane %v2019, %v2024
    %v2027 = vunpack.c.l.s4 1934713408
    %v2028 = vunpack.c.0.s8 %v2027
    %v2029 = vperm.slane %v2021, %v2028
    %v2030 = vrot.slane %v2001, 4
    %v2031 = vsel %vm206, %v2030, %v1989
    %v2032 = vrot.slane %v1989, 4
    %v2033 = vsel %vm206, %v2001, %v2032
    %v2035 = vunpack.c.l.s4 1934713408
    %v2036 = vunpack.c.0.s8 %v2035
    %v2037 = vperm.slane %v2031, %v2036
    %v2039 = vunpack.c.l.s4 1934713408
    %v2040 = vunpack.c.0.s8 %v2039
    %v2041 = vperm.slane %v2033, %v2040
    %v2042 = vrot.slane %v2005, 4
    %v2043 = vsel %vm206, %v2042, %v1993
    %v2044 = vrot.slane %v1993, 4
    %v2045 = vsel %vm206, %v2005, %v2044
    %v2047 = vunpack.c.l.s4 1934713408
    %v2048 = vunpack.c.0.s8 %v2047
    %v2049 = vperm.slane %v2043, %v2048
    %v2051 = vunpack.c.l.s4 1934713408
    %v2052 = vunpack.c.0.s8 %v2051
    %v2053 = vperm.slane %v2045, %v2052
    %v2054 = vrot.slane %v2037, 4
    %v2055 = vsel %vm206, %v2054, %v2013
    %v2056 = vrot.slane %v2013, 4
    %v2057 = vsel %vm206, %v2037, %v2056
    %v2058 = vrot.slane %v2041, 4
    %v2059 = vsel %vm206, %v2058, %v2017
    %v2060 = vrot.slane %v2017, 4
    %v2061 = vsel %vm206, %v2041, %v2060
    %v2062 = vrot.slane %v2049, 4
    %v2063 = vsel %vm206, %v2062, %v2025
    %v2064 = vrot.slane %v2025, 4
    %v2065 = vsel %vm206, %v2049, %v2064
    %v2066 = vrot.slane %v2053, 4
    %v2067 = vsel %vm206, %v2066, %v2029
    %v2068 = vrot.slane %v2029, 4
    %v2069 = vsel %vm206, %v2053, %v2068
    %v2070 = vrot.slane %v1701, 4
    %v2071 = vsel %vm206, %v2070, %v1689
    %v2072 = vrot.slane %v1689, 4
    %v2073 = vsel %vm206, %v1701, %v2072
    %v2075 = vunpack.c.l.s4 1983009808
    %v2076 = vunpack.c.0.s8 %v2075
    %v2077 = vperm.slane %v2071, %v2076
    %v2079 = vunpack.c.l.s4 1983009808
    %v2080 = vunpack.c.0.s8 %v2079
    %v2081 = vperm.slane %v2073, %v2080
    %v2082 = vrot.slane %v1707, 4
    %v2083 = vsel %vm206, %v2082, %v1695
    %v2084 = vrot.slane %v1695, 4
    %v2085 = vsel %vm206, %v1707, %v2084
    %v2087 = vunpack.c.l.s4 1983009808
    %v2088 = vunpack.c.0.s8 %v2087
    %v2089 = vperm.slane %v2083, %v2088
    %v2091 = vunpack.c.l.s4 1983009808
    %v2092 = vunpack.c.0.s8 %v2091
    %v2093 = vperm.slane %v2085, %v2092
    %v2094 = vrot.slane %v1725, 4
    %v2095 = vsel %vm206, %v2094, %v1713
    %v2096 = vrot.slane %v1713, 4
    %v2097 = vsel %vm206, %v1725, %v2096
    %v2099 = vunpack.c.l.s4 1983009808
    %v2100 = vunpack.c.0.s8 %v2099
    %v2101 = vperm.slane %v2095, %v2100
    %v2103 = vunpack.c.l.s4 1983009808
    %v2104 = vunpack.c.0.s8 %v2103
    %v2105 = vperm.slane %v2097, %v2104
    %v2106 = vrot.slane %v1731, 4
    %v2107 = vsel %vm206, %v2106, %v1719
    %v2108 = vrot.slane %v1719, 4
    %v2109 = vsel %vm206, %v1731, %v2108
    %v2111 = vunpack.c.l.s4 1983009808
    %v2112 = vunpack.c.0.s8 %v2111
    %v2113 = vperm.slane %v2107, %v2112
    %v2115 = vunpack.c.l.s4 1983009808
    %v2116 = vunpack.c.0.s8 %v2115
    %v2117 = vperm.slane %v2109, %v2116
    %v2118 = vrot.slane %v2089, 4
    %v2119 = vsel %vm206, %v2118, %v2077
    %v2120 = vrot.slane %v2077, 4
    %v2121 = vsel %vm206, %v2089, %v2120
    %v2123 = vunpack.c.l.s4 1934713408
    %v2124 = vunpack.c.0.s8 %v2123
    %v2125 = vperm.slane %v2119, %v2124
    %v2127 = vunpack.c.l.s4 1934713408
    %v2128 = vunpack.c.0.s8 %v2127
    %v2129 = vperm.slane %v2121, %v2128
    %v2130 = vrot.slane %v2093, 4
    %v2131 = vsel %vm206, %v2130, %v2081
    %v2132 = vrot.slane %v2081, 4
    %v2133 = vsel %vm206, %v2093, %v2132
    %v2135 = vunpack.c.l.s4 1934713408
    %v2136 = vunpack.c.0.s8 %v2135
    %v2137 = vperm.slane %v2131, %v2136
    %v2139 = vunpack.c.l.s4 1934713408
    %v2140 = vunpack.c.0.s8 %v2139
    %v2141 = vperm.slane %v2133, %v2140
    %v2142 = vrot.slane %v2113, 4
    %v2143 = vsel %vm206, %v2142, %v2101
    %v2144 = vrot.slane %v2101, 4
    %v2145 = vsel %vm206, %v2113, %v2144
    %v2147 = vunpack.c.l.s4 1934713408
    %v2148 = vunpack.c.0.s8 %v2147
    %v2149 = vperm.slane %v2143, %v2148
    %v2151 = vunpack.c.l.s4 1934713408
    %v2152 = vunpack.c.0.s8 %v2151
    %v2153 = vperm.slane %v2145, %v2152
    %v2154 = vrot.slane %v2117, 4
    %v2155 = vsel %vm206, %v2154, %v2105
    %v2156 = vrot.slane %v2105, 4
    %v2157 = vsel %vm206, %v2117, %v2156
    %v2159 = vunpack.c.l.s4 1934713408
    %v2160 = vunpack.c.0.s8 %v2159
    %v2161 = vperm.slane %v2155, %v2160
    %v2163 = vunpack.c.l.s4 1934713408
    %v2164 = vunpack.c.0.s8 %v2163
    %v2165 = vperm.slane %v2157, %v2164
    %v2166 = vrot.slane %v2149, 4
    %v2167 = vsel %vm206, %v2166, %v2125
    %v2168 = vrot.slane %v2125, 4
    %v2169 = vsel %vm206, %v2149, %v2168
    %v2170 = vrot.slane %v2153, 4
    %v2171 = vsel %vm206, %v2170, %v2129
    %v2172 = vrot.slane %v2129, 4
    %v2173 = vsel %vm206, %v2153, %v2172
    %v2174 = vrot.slane %v2161, 4
    %v2175 = vsel %vm206, %v2174, %v2137
    %v2176 = vrot.slane %v2137, 4
    %v2177 = vsel %vm206, %v2161, %v2176
    %v2178 = vrot.slane %v2165, 4
    %v2179 = vsel %vm206, %v2178, %v2141
    %v2180 = vrot.slane %v2141, 4
    %v2181 = vsel %vm206, %v2165, %v2180
    %v2182 = vrot.slane %v1835, 4
    %v2183 = vsel %vm206, %v2182, %v1831
    %v2184 = vrot.slane %v1831, 4
    %v2185 = vsel %vm206, %v1835, %v2184
    %v2187 = vunpack.c.l.s4 1983009808
    %v2188 = vunpack.c.0.s8 %v2187
    %v2189 = vperm.slane %v2183, %v2188
    %v2191 = vunpack.c.l.s4 1983009808
    %v2192 = vunpack.c.0.s8 %v2191
    %v2193 = vperm.slane %v2185, %v2192
    %v2194 = vrot.slane %v1837, 4
    %v2195 = vsel %vm206, %v2194, %v1833
    %v2196 = vrot.slane %v1833, 4
    %v2197 = vsel %vm206, %v1837, %v2196
    %v2199 = vunpack.c.l.s4 1983009808
    %v2200 = vunpack.c.0.s8 %v2199
    %v2201 = vperm.slane %v2195, %v2200
    %v2203 = vunpack.c.l.s4 1983009808
    %v2204 = vunpack.c.0.s8 %v2203
    %v2205 = vperm.slane %v2197, %v2204
    %v2206 = vrot.slane %v1843, 4
    %v2207 = vsel %vm206, %v2206, %v1839
    %v2208 = vrot.slane %v1839, 4
    %v2209 = vsel %vm206, %v1843, %v2208
    %v2211 = vunpack.c.l.s4 1983009808
    %v2212 = vunpack.c.0.s8 %v2211
    %v2213 = vperm.slane %v2207, %v2212
    %v2215 = vunpack.c.l.s4 1983009808
    %v2216 = vunpack.c.0.s8 %v2215
    %v2217 = vperm.slane %v2209, %v2216
    %v2218 = vrot.slane %v1845, 4
    %v2219 = vsel %vm206, %v2218, %v1841
    %v2220 = vrot.slane %v1841, 4
    %v2221 = vsel %vm206, %v1845, %v2220
    %v2223 = vunpack.c.l.s4 1983009808
    %v2224 = vunpack.c.0.s8 %v2223
    %v2225 = vperm.slane %v2219, %v2224
    %v2227 = vunpack.c.l.s4 1983009808
    %v2228 = vunpack.c.0.s8 %v2227
    %v2229 = vperm.slane %v2221, %v2228
    %v2230 = vrot.slane %v2201, 4
    %v2231 = vsel %vm206, %v2230, %v2189
    %v2232 = vrot.slane %v2189, 4
    %v2233 = vsel %vm206, %v2201, %v2232
    %v2235 = vunpack.c.l.s4 1934713408
    %v2236 = vunpack.c.0.s8 %v2235
    %v2237 = vperm.slane %v2231, %v2236
    %v2239 = vunpack.c.l.s4 1934713408
    %v2240 = vunpack.c.0.s8 %v2239
    %v2241 = vperm.slane %v2233, %v2240
    %v2242 = vrot.slane %v2205, 4
    %v2243 = vsel %vm206, %v2242, %v2193
    %v2244 = vrot.slane %v2193, 4
    %v2245 = vsel %vm206, %v2205, %v2244
    %v2247 = vunpack.c.l.s4 1934713408
    %v2248 = vunpack.c.0.s8 %v2247
    %v2249 = vperm.slane %v2243, %v2248
    %v2251 = vunpack.c.l.s4 1934713408
    %v2252 = vunpack.c.0.s8 %v2251
    %v2253 = vperm.slane %v2245, %v2252
    %v2254 = vrot.slane %v2225, 4
    %v2255 = vsel %vm206, %v2254, %v2213
    %v2256 = vrot.slane %v2213, 4
    %v2257 = vsel %vm206, %v2225, %v2256
    %v2259 = vunpack.c.l.s4 1934713408
    %v2260 = vunpack.c.0.s8 %v2259
    %v2261 = vperm.slane %v2255, %v2260
    %v2263 = vunpack.c.l.s4 1934713408
    %v2264 = vunpack.c.0.s8 %v2263
    %v2265 = vperm.slane %v2257, %v2264
    %v2266 = vrot.slane %v2229, 4
    %v2267 = vsel %vm206, %v2266, %v2217
    %v2268 = vrot.slane %v2217, 4
    %v2269 = vsel %vm206, %v2229, %v2268
    %v2271 = vunpack.c.l.s4 1934713408
    %v2272 = vunpack.c.0.s8 %v2271
    %v2273 = vperm.slane %v2267, %v2272
    %v2275 = vunpack.c.l.s4 1934713408
    %v2276 = vunpack.c.0.s8 %v2275
    %v2277 = vperm.slane %v2269, %v2276
    %v2278 = vrot.slane %v2261, 4
    %v2279 = vsel %vm206, %v2278, %v2237
    %v2280 = vrot.slane %v2237, 4
    %v2281 = vsel %vm206, %v2261, %v2280
    %v2282 = vrot.slane %v2265, 4
    %v2283 = vsel %vm206, %v2282, %v2241
    %v2284 = vrot.slane %v2241, 4
    %v2285 = vsel %vm206, %v2265, %v2284
    %v2286 = vrot.slane %v2273, 4
    %v2287 = vsel %vm206, %v2286, %v2249
    %v2288 = vrot.slane %v2249, 4
    %v2289 = vsel %vm206, %v2273, %v2288
    %v2290 = vrot.slane %v2277, 4
    %v2291 = vsel %vm206, %v2290, %v2253
    %v2292 = vrot.slane %v2253, 4
    %v2293 = vsel %vm206, %v2277, %v2292
    %v2294 = vrot.slane %v2059, 4
    %v2295 = vsel %vm206, %v2294, %v2055
    %v2296 = vrot.slane %v2055, 4
    %v2297 = vsel %vm206, %v2059, %v2296
    %v2299 = vunpack.c.l.s4 1983009808
    %v2300 = vunpack.c.0.s8 %v2299
    %v2301 = vperm.slane %v2295, %v2300
    %v2303 = vunpack.c.l.s4 1983009808
    %v2304 = vunpack.c.0.s8 %v2303
    %v2305 = vperm.slane %v2297, %v2304
    %v2306 = vrot.slane %v2061, 4
    %v2307 = vsel %vm206, %v2306, %v2057
    %v2308 = vrot.slane %v2057, 4
    %v2309 = vsel %vm206, %v2061, %v2308
    %v2311 = vunpack.c.l.s4 1983009808
    %v2312 = vunpack.c.0.s8 %v2311
    %v2313 = vperm.slane %v2307, %v2312
    %v2315 = vunpack.c.l.s4 1983009808
    %v2316 = vunpack.c.0.s8 %v2315
    %v2317 = vperm.slane %v2309, %v2316
    %v2318 = vrot.slane %v2067, 4
    %v2319 = vsel %vm206, %v2318, %v2063
    %v2320 = vrot.slane %v2063, 4
    %v2321 = vsel %vm206, %v2067, %v2320
    %v2323 = vunpack.c.l.s4 1983009808
    %v2324 = vunpack.c.0.s8 %v2323
    %v2325 = vperm.slane %v2319, %v2324
    %v2327 = vunpack.c.l.s4 1983009808
    %v2328 = vunpack.c.0.s8 %v2327
    %v2329 = vperm.slane %v2321, %v2328
    %v2330 = vrot.slane %v2069, 4
    %v2331 = vsel %vm206, %v2330, %v2065
    %v2332 = vrot.slane %v2065, 4
    %v2333 = vsel %vm206, %v2069, %v2332
    %v2335 = vunpack.c.l.s4 1983009808
    %v2336 = vunpack.c.0.s8 %v2335
    %v2337 = vperm.slane %v2331, %v2336
    %v2339 = vunpack.c.l.s4 1983009808
    %v2340 = vunpack.c.0.s8 %v2339
    %v2341 = vperm.slane %v2333, %v2340
    %v2342 = vrot.slane %v2313, 4
    %v2343 = vsel %vm206, %v2342, %v2301
    %v2344 = vrot.slane %v2301, 4
    %v2345 = vsel %vm206, %v2313, %v2344
    %v2347 = vunpack.c.l.s4 1934713408
    %v2348 = vunpack.c.0.s8 %v2347
    %v2349 = vperm.slane %v2343, %v2348
    %v2351 = vunpack.c.l.s4 1934713408
    %v2352 = vunpack.c.0.s8 %v2351
    %v2353 = vperm.slane %v2345, %v2352
    %v2354 = vrot.slane %v2317, 4
    %v2355 = vsel %vm206, %v2354, %v2305
    %v2356 = vrot.slane %v2305, 4
    %v2357 = vsel %vm206, %v2317, %v2356
    %v2359 = vunpack.c.l.s4 1934713408
    %v2360 = vunpack.c.0.s8 %v2359
    %v2361 = vperm.slane %v2355, %v2360
    %v2363 = vunpack.c.l.s4 1934713408
    %v2364 = vunpack.c.0.s8 %v2363
    %v2365 = vperm.slane %v2357, %v2364
    %v2366 = vrot.slane %v2337, 4
    %v2367 = vsel %vm206, %v2366, %v2325
    %v2368 = vrot.slane %v2325, 4
    %v2369 = vsel %vm206, %v2337, %v2368
    %v2371 = vunpack.c.l.s4 1934713408
    %v2372 = vunpack.c.0.s8 %v2371
    %v2373 = vperm.slane %v2367, %v2372
    %v2375 = vunpack.c.l.s4 1934713408
    %v2376 = vunpack.c.0.s8 %v2375
    %v2377 = vperm.slane %v2369, %v2376
    %v2378 = vrot.slane %v2341, 4
    %v2379 = vsel %vm206, %v2378, %v2329
    %v2380 = vrot.slane %v2329, 4
    %v2381 = vsel %vm206, %v2341, %v2380
    %v2383 = vunpack.c.l.s4 1934713408
    %v2384 = vunpack.c.0.s8 %v2383
    %v2385 = vperm.slane %v2379, %v2384
    %v2387 = vunpack.c.l.s4 1934713408
    %v2388 = vunpack.c.0.s8 %v2387
    %v2389 = vperm.slane %v2381, %v2388
    %v2390 = vrot.slane %v2373, 4
    %v2391 = vsel %vm206, %v2390, %v2349
    %v2392 = vrot.slane %v2349, 4
    %v2393 = vsel %vm206, %v2373, %v2392
    %v2394 = vrot.slane %v2377, 4
    %v2395 = vsel %vm206, %v2394, %v2353
    %v2396 = vrot.slane %v2353, 4
    %v2397 = vsel %vm206, %v2377, %v2396
    %v2398 = vrot.slane %v2385, 4
    %v2399 = vsel %vm206, %v2398, %v2361
    %v2400 = vrot.slane %v2361, 4
    %v2401 = vsel %vm206, %v2385, %v2400
    %v2402 = vrot.slane %v2389, 4
    %v2403 = vsel %vm206, %v2402, %v2365
    %v2404 = vrot.slane %v2365, 4
    %v2405 = vsel %vm206, %v2389, %v2404
    %v2406 = vrot.slane %v1947, 4
    %v2407 = vsel %vm206, %v2406, %v1943
    %v2409 = vunpack.c.l.s4 1983009808
    %v2410 = vunpack.c.0.s8 %v2409
    %v2411 = vperm.slane %v2407, %v2410
    %v2412 = vrot.slane %v1949, 4
    %v2413 = vsel %vm206, %v2412, %v1945
    %v2415 = vunpack.c.l.s4 1983009808
    %v2416 = vunpack.c.0.s8 %v2415
    %v2417 = vperm.slane %v2413, %v2416
    %v2418 = vrot.slane %v1955, 4
    %v2419 = vsel %vm206, %v2418, %v1951
    %v2421 = vunpack.c.l.s4 1983009808
    %v2422 = vunpack.c.0.s8 %v2421
    %v2423 = vperm.slane %v2419, %v2422
    %v2424 = vrot.slane %v1957, 4
    %v2425 = vsel %vm206, %v2424, %v1953
    %v2427 = vunpack.c.l.s4 1983009808
    %v2428 = vunpack.c.0.s8 %v2427
    %v2429 = vperm.slane %v2425, %v2428
    %v2430 = vrot.slane %v2417, 4
    %v2431 = vsel %vm206, %v2430, %v2411
    %v2432 = vrot.slane %v2411, 4
    %v2433 = vsel %vm206, %v2417, %v2432
    %v2435 = vunpack.c.l.s4 1934713408
    %v2436 = vunpack.c.0.s8 %v2435
    %v2437 = vperm.slane %v2431, %v2436
    %v2439 = vunpack.c.l.s4 1934713408
    %v2440 = vunpack.c.0.s8 %v2439
    %v2441 = vperm.slane %v2433, %v2440
    %v2442 = vrot.slane %v2429, 4
    %v2443 = vsel %vm206, %v2442, %v2423
    %v2444 = vrot.slane %v2423, 4
    %v2445 = vsel %vm206, %v2429, %v2444
    %v2447 = vunpack.c.l.s4 1934713408
    %v2448 = vunpack.c.0.s8 %v2447
    %v2449 = vperm.slane %v2443, %v2448
    %v2451 = vunpack.c.l.s4 1934713408
    %v2452 = vunpack.c.0.s8 %v2451
    %v2453 = vperm.slane %v2445, %v2452
    %v2454 = vrot.slane %v2449, 4
    %v2455 = vsel %vm206, %v2454, %v2437
    %v2456 = vrot.slane %v2437, 4
    %v2457 = vsel %vm206, %v2449, %v2456
    %v2458 = vrot.slane %v2453, 4
    %v2459 = vsel %vm206, %v2458, %v2441
    %v2460 = vrot.slane %v2441, 4
    %v2461 = vsel %vm206, %v2453, %v2460
    %v2462 = vrot.slane %v2171, 4
    %v2463 = vsel %vm206, %v2462, %v2167
    %v2465 = vunpack.c.l.s4 1983009808
    %v2466 = vunpack.c.0.s8 %v2465
    %v2467 = vperm.slane %v2463, %v2466
    %v2468 = vrot.slane %v2173, 4
    %v2469 = vsel %vm206, %v2468, %v2169
    %v2471 = vunpack.c.l.s4 1983009808
    %v2472 = vunpack.c.0.s8 %v2471
    %v2473 = vperm.slane %v2469, %v2472
    %v2474 = vrot.slane %v2179, 4
    %v2475 = vsel %vm206, %v2474, %v2175
    %v2477 = vunpack.c.l.s4 1983009808
    %v2478 = vunpack.c.0.s8 %v2477
    %v2479 = vperm.slane %v2475, %v2478
    %v2480 = vrot.slane %v2181, 4
    %v2481 = vsel %vm206, %v2480, %v2177
    %v2483 = vunpack.c.l.s4 1983009808
    %v2484 = vunpack.c.0.s8 %v2483
    %v2485 = vperm.slane %v2481, %v2484
    %v2486 = vrot.slane %v2473, 4
    %v2487 = vsel %vm206, %v2486, %v2467
    %v2488 = vrot.slane %v2467, 4
    %v2489 = vsel %vm206, %v2473, %v2488
    %v2491 = vunpack.c.l.s4 1934713408
    %v2492 = vunpack.c.0.s8 %v2491
    %v2493 = vperm.slane %v2487, %v2492
    %v2495 = vunpack.c.l.s4 1934713408
    %v2496 = vunpack.c.0.s8 %v2495
    %v2497 = vperm.slane %v2489, %v2496
    %v2498 = vrot.slane %v2485, 4
    %v2499 = vsel %vm206, %v2498, %v2479
    %v2500 = vrot.slane %v2479, 4
    %v2501 = vsel %vm206, %v2485, %v2500
    %v2503 = vunpack.c.l.s4 1934713408
    %v2504 = vunpack.c.0.s8 %v2503
    %v2505 = vperm.slane %v2499, %v2504
    %v2507 = vunpack.c.l.s4 1934713408
    %v2508 = vunpack.c.0.s8 %v2507
    %v2509 = vperm.slane %v2501, %v2508
    %v2510 = vrot.slane %v2505, 4
    %v2511 = vsel %vm206, %v2510, %v2493
    %v2512 = vrot.slane %v2493, 4
    %v2513 = vsel %vm206, %v2505, %v2512
    %v2514 = vrot.slane %v2509, 4
    %v2515 = vsel %vm206, %v2514, %v2497
    %v2516 = vrot.slane %v2497, 4
    %v2517 = vsel %vm206, %v2509, %v2516
    %v2519 = vsel %vm83, %v1611, 0
    %v2522 = vsel %vm83, %v1612, 0
    %2524 = vmatpush.msra.mxu0 0.0
    %2525 = vmatpush.msra.mxu0 0.0
    %2526 = vmatpush.msra.mxu0 0.0
    %2527 = vmatpush.msra.mxu0 0.0
    %2528 = vmatpush.msra.mxu0 0.0
    %2529 = vmatpush.msra.mxu0 0.0
    %2530 = vmatpush.msra.mxu0 0.0
    %2531 = vmatpush.msra.mxu0 0.0
    %2532 = vmatpush.msra.mxu0 0.0
    %2533 = vmatpush.msra.mxu0 0.0
    %2534 = vmatpush.msra.mxu0 0.0
    %2535 = vmatpush.msra.mxu0 0.0
    %2536 = vmatpush.msra.mxu0 %v42
    %2537 = vmatpush.msra.mxu0 %v41
    %2538 = vmatpush.msra.mxu0 %v40
    %2539 = vmatpush.msra.mxu0 %v39
    %2540 = vmatmul.f32.gmra.mxu0 %v2519
    %v2541 = vpop.f32.mrf.mxu0
    %v2542 = vadd.f32 0.0, %v2541
    %2543 = vmatmul.f32.gmra.mxu0 %v2522
    %v2544 = vpop.f32.mrf.mxu0
    %v2545 = vadd.f32 0.0, %v2544
    %2546 = vdwg.mxu0
    %2549 = vrot.lane.b32.xlu0 %v2542, 120
    %v2550 = vpop.permute.xlu0 %2549
    %2551 = vrot.lane.b32.xlu0 %v2545, 120
    %v2552 = vpop.permute.xlu0 %2551
    %2555 = vrot.lane.b32.xlu0 %v2542, 112
    %v2556 = vpop.permute.xlu0 %2555
    %2557 = vrot.lane.b32.xlu0 %v2545, 112
    %v2558 = vpop.permute.xlu0 %2557
    %2561 = vrot.lane.b32.xlu0 %v2542, 104
    %v2562 = vpop.permute.xlu0 %2561
    %2563 = vrot.lane.b32.xlu0 %v2545, 104
    %v2564 = vpop.permute.xlu0 %2563
    %2567 = vrot.lane.b32.xlu0 %v2542, 96
    %v2568 = vpop.permute.xlu0 %2567
    %2569 = vrot.lane.b32.xlu0 %v2545, 96
    %v2570 = vpop.permute.xlu0 %2569
    %2573 = vrot.lane.b32.xlu0 %v2542, 88
    %v2574 = vpop.permute.xlu0 %2573
    %2575 = vrot.lane.b32.xlu0 %v2545, 88
    %v2576 = vpop.permute.xlu0 %2575
    %2579 = vrot.lane.b32.xlu0 %v2542, 80
    %v2580 = vpop.permute.xlu0 %2579
    %2581 = vrot.lane.b32.xlu0 %v2545, 80
    %v2582 = vpop.permute.xlu0 %2581
    %2585 = vrot.lane.b32.xlu0 %v2542, 72
    %v2586 = vpop.permute.xlu0 %2585
    %2587 = vrot.lane.b32.xlu0 %v2545, 72
    %v2588 = vpop.permute.xlu0 %2587
    %v2591 = vrot.slane %v2556, 4
    %v2592 = vsel %vm206, %v2591, %v2542
    %v2593 = vrot.slane %v2542, 4
    %v2594 = vsel %vm206, %v2556, %v2593
    %v2596 = vunpack.c.l.s4 1983009808
    %v2597 = vunpack.c.0.s8 %v2596
    %v2598 = vperm.slane %v2592, %v2597
    %v2600 = vunpack.c.l.s4 1983009808
    %v2601 = vunpack.c.0.s8 %v2600
    %v2602 = vperm.slane %v2594, %v2601
    %v2603 = vrot.slane %v2562, 4
    %v2604 = vsel %vm206, %v2603, %v2550
    %v2605 = vrot.slane %v2550, 4
    %v2606 = vsel %vm206, %v2562, %v2605
    %v2608 = vunpack.c.l.s4 1983009808
    %v2609 = vunpack.c.0.s8 %v2608
    %v2610 = vperm.slane %v2604, %v2609
    %v2612 = vunpack.c.l.s4 1983009808
    %v2613 = vunpack.c.0.s8 %v2612
    %v2614 = vperm.slane %v2606, %v2613
    %v2615 = vrot.slane %v2580, 4
    %v2616 = vsel %vm206, %v2615, %v2568
    %v2617 = vrot.slane %v2568, 4
    %v2618 = vsel %vm206, %v2580, %v2617
    %v2620 = vunpack.c.l.s4 1983009808
    %v2621 = vunpack.c.0.s8 %v2620
    %v2622 = vperm.slane %v2616, %v2621
    %v2624 = vunpack.c.l.s4 1983009808
    %v2625 = vunpack.c.0.s8 %v2624
    %v2626 = vperm.slane %v2618, %v2625
    %v2627 = vrot.slane %v2586, 4
    %v2628 = vsel %vm206, %v2627, %v2574
    %v2629 = vrot.slane %v2574, 4
    %v2630 = vsel %vm206, %v2586, %v2629
    %v2632 = vunpack.c.l.s4 1983009808
    %v2633 = vunpack.c.0.s8 %v2632
    %v2634 = vperm.slane %v2628, %v2633
    %v2636 = vunpack.c.l.s4 1983009808
    %v2637 = vunpack.c.0.s8 %v2636
    %v2638 = vperm.slane %v2630, %v2637
    %v2639 = vrot.slane %v2610, 4
    %v2640 = vsel %vm206, %v2639, %v2598
    %v2641 = vrot.slane %v2598, 4
    %v2642 = vsel %vm206, %v2610, %v2641
    %v2644 = vunpack.c.l.s4 1934713408
    %v2645 = vunpack.c.0.s8 %v2644
    %v2646 = vperm.slane %v2640, %v2645
    %v2648 = vunpack.c.l.s4 1934713408
    %v2649 = vunpack.c.0.s8 %v2648
    %v2650 = vperm.slane %v2642, %v2649
    %v2651 = vrot.slane %v2614, 4
    %v2652 = vsel %vm206, %v2651, %v2602
    %v2653 = vrot.slane %v2602, 4
    %v2654 = vsel %vm206, %v2614, %v2653
    %v2656 = vunpack.c.l.s4 1934713408
    %v2657 = vunpack.c.0.s8 %v2656
    %v2658 = vperm.slane %v2652, %v2657
    %v2660 = vunpack.c.l.s4 1934713408
    %v2661 = vunpack.c.0.s8 %v2660
    %v2662 = vperm.slane %v2654, %v2661
    %v2663 = vrot.slane %v2634, 4
    %v2664 = vsel %vm206, %v2663, %v2622
    %v2665 = vrot.slane %v2622, 4
    %v2666 = vsel %vm206, %v2634, %v2665
    %v2668 = vunpack.c.l.s4 1934713408
    %v2669 = vunpack.c.0.s8 %v2668
    %v2670 = vperm.slane %v2664, %v2669
    %v2672 = vunpack.c.l.s4 1934713408
    %v2673 = vunpack.c.0.s8 %v2672
    %v2674 = vperm.slane %v2666, %v2673
    %v2675 = vrot.slane %v2638, 4
    %v2676 = vsel %vm206, %v2675, %v2626
    %v2677 = vrot.slane %v2626, 4
    %v2678 = vsel %vm206, %v2638, %v2677
    %v2680 = vunpack.c.l.s4 1934713408
    %v2681 = vunpack.c.0.s8 %v2680
    %v2682 = vperm.slane %v2676, %v2681
    %v2684 = vunpack.c.l.s4 1934713408
    %v2685 = vunpack.c.0.s8 %v2684
    %v2686 = vperm.slane %v2678, %v2685
    %v2687 = vrot.slane %v2670, 4
    %v2688 = vsel %vm206, %v2687, %v2646
    %v2689 = vrot.slane %v2646, 4
    %v2690 = vsel %vm206, %v2670, %v2689
    %v2691 = vrot.slane %v2674, 4
    %v2692 = vsel %vm206, %v2691, %v2650
    %v2693 = vrot.slane %v2650, 4
    %v2694 = vsel %vm206, %v2674, %v2693
    %v2695 = vrot.slane %v2682, 4
    %v2696 = vsel %vm206, %v2695, %v2658
    %v2697 = vrot.slane %v2658, 4
    %v2698 = vsel %vm206, %v2682, %v2697
    %v2699 = vrot.slane %v2686, 4
    %v2700 = vsel %vm206, %v2699, %v2662
    %v2701 = vrot.slane %v2662, 4
    %v2702 = vsel %vm206, %v2686, %v2701
    %v2703 = vrot.slane %v2558, 4
    %v2704 = vsel %vm206, %v2703, %v2545
    %v2705 = vrot.slane %v2545, 4
    %v2706 = vsel %vm206, %v2558, %v2705
    %v2708 = vunpack.c.l.s4 1983009808
    %v2709 = vunpack.c.0.s8 %v2708
    %v2710 = vperm.slane %v2704, %v2709
    %v2712 = vunpack.c.l.s4 1983009808
    %v2713 = vunpack.c.0.s8 %v2712
    %v2714 = vperm.slane %v2706, %v2713
    %v2715 = vrot.slane %v2564, 4
    %v2716 = vsel %vm206, %v2715, %v2552
    %v2717 = vrot.slane %v2552, 4
    %v2718 = vsel %vm206, %v2564, %v2717
    %v2720 = vunpack.c.l.s4 1983009808
    %v2721 = vunpack.c.0.s8 %v2720
    %v2722 = vperm.slane %v2716, %v2721
    %v2724 = vunpack.c.l.s4 1983009808
    %v2725 = vunpack.c.0.s8 %v2724
    %v2726 = vperm.slane %v2718, %v2725
    %v2727 = vrot.slane %v2582, 4
    %v2728 = vsel %vm206, %v2727, %v2570
    %v2729 = vrot.slane %v2570, 4
    %v2730 = vsel %vm206, %v2582, %v2729
    %v2732 = vunpack.c.l.s4 1983009808
    %v2733 = vunpack.c.0.s8 %v2732
    %v2734 = vperm.slane %v2728, %v2733
    %v2736 = vunpack.c.l.s4 1983009808
    %v2737 = vunpack.c.0.s8 %v2736
    %v2738 = vperm.slane %v2730, %v2737
    %v2739 = vrot.slane %v2588, 4
    %v2740 = vsel %vm206, %v2739, %v2576
    %v2741 = vrot.slane %v2576, 4
    %v2742 = vsel %vm206, %v2588, %v2741
    %v2744 = vunpack.c.l.s4 1983009808
    %v2745 = vunpack.c.0.s8 %v2744
    %v2746 = vperm.slane %v2740, %v2745
    %v2748 = vunpack.c.l.s4 1983009808
    %v2749 = vunpack.c.0.s8 %v2748
    %v2750 = vperm.slane %v2742, %v2749
    %v2751 = vrot.slane %v2722, 4
    %v2752 = vsel %vm206, %v2751, %v2710
    %v2753 = vrot.slane %v2710, 4
    %v2754 = vsel %vm206, %v2722, %v2753
    %v2756 = vunpack.c.l.s4 1934713408
    %v2757 = vunpack.c.0.s8 %v2756
    %v2758 = vperm.slane %v2752, %v2757
    %v2760 = vunpack.c.l.s4 1934713408
    %v2761 = vunpack.c.0.s8 %v2760
    %v2762 = vperm.slane %v2754, %v2761
    %v2763 = vrot.slane %v2726, 4
    %v2764 = vsel %vm206, %v2763, %v2714
    %v2765 = vrot.slane %v2714, 4
    %v2766 = vsel %vm206, %v2726, %v2765
    %v2768 = vunpack.c.l.s4 1934713408
    %v2769 = vunpack.c.0.s8 %v2768
    %v2770 = vperm.slane %v2764, %v2769
    %v2772 = vunpack.c.l.s4 1934713408
    %v2773 = vunpack.c.0.s8 %v2772
    %v2774 = vperm.slane %v2766, %v2773
    %v2775 = vrot.slane %v2746, 4
    %v2776 = vsel %vm206, %v2775, %v2734
    %v2777 = vrot.slane %v2734, 4
    %v2778 = vsel %vm206, %v2746, %v2777
    %v2780 = vunpack.c.l.s4 1934713408
    %v2781 = vunpack.c.0.s8 %v2780
    %v2782 = vperm.slane %v2776, %v2781
    %v2784 = vunpack.c.l.s4 1934713408
    %v2785 = vunpack.c.0.s8 %v2784
    %v2786 = vperm.slane %v2778, %v2785
    %v2787 = vrot.slane %v2750, 4
    %v2788 = vsel %vm206, %v2787, %v2738
    %v2789 = vrot.slane %v2738, 4
    %v2790 = vsel %vm206, %v2750, %v2789
    %v2792 = vunpack.c.l.s4 1934713408
    %v2793 = vunpack.c.0.s8 %v2792
    %v2794 = vperm.slane %v2788, %v2793
    %v2796 = vunpack.c.l.s4 1934713408
    %v2797 = vunpack.c.0.s8 %v2796
    %v2798 = vperm.slane %v2790, %v2797
    %v2799 = vrot.slane %v2782, 4
    %v2800 = vsel %vm206, %v2799, %v2758
    %v2801 = vrot.slane %v2758, 4
    %v2802 = vsel %vm206, %v2782, %v2801
    %v2803 = vrot.slane %v2786, 4
    %v2804 = vsel %vm206, %v2803, %v2762
    %v2805 = vrot.slane %v2762, 4
    %v2806 = vsel %vm206, %v2786, %v2805
    %v2807 = vrot.slane %v2794, 4
    %v2808 = vsel %vm206, %v2807, %v2770
    %v2809 = vrot.slane %v2770, 4
    %v2810 = vsel %vm206, %v2794, %v2809
    %v2811 = vrot.slane %v2798, 4
    %v2812 = vsel %vm206, %v2811, %v2774
    %v2813 = vrot.slane %v2774, 4
    %v2814 = vsel %vm206, %v2798, %v2813
    %v2815 = vrot.slane %v2692, 4
    %v2816 = vsel %vm206, %v2815, %v2688
    %v2818 = vunpack.c.l.s4 1983009808
    %v2819 = vunpack.c.0.s8 %v2818
    %v2820 = vperm.slane %v2816, %v2819
    %v2821 = vrot.slane %v2694, 4
    %v2822 = vsel %vm206, %v2821, %v2690
    %v2824 = vunpack.c.l.s4 1983009808
    %v2825 = vunpack.c.0.s8 %v2824
    %v2826 = vperm.slane %v2822, %v2825
    %v2827 = vrot.slane %v2700, 4
    %v2828 = vsel %vm206, %v2827, %v2696
    %v2830 = vunpack.c.l.s4 1983009808
    %v2831 = vunpack.c.0.s8 %v2830
    %v2832 = vperm.slane %v2828, %v2831
    %v2833 = vrot.slane %v2702, 4
    %v2834 = vsel %vm206, %v2833, %v2698
    %v2836 = vunpack.c.l.s4 1983009808
    %v2837 = vunpack.c.0.s8 %v2836
    %v2838 = vperm.slane %v2834, %v2837
    %v2839 = vrot.slane %v2826, 4
    %v2840 = vsel %vm206, %v2839, %v2820
    %v2841 = vrot.slane %v2820, 4
    %v2842 = vsel %vm206, %v2826, %v2841
    %v2844 = vunpack.c.l.s4 1934713408
    %v2845 = vunpack.c.0.s8 %v2844
    %v2846 = vperm.slane %v2840, %v2845
    %v2848 = vunpack.c.l.s4 1934713408
    %v2849 = vunpack.c.0.s8 %v2848
    %v2850 = vperm.slane %v2842, %v2849
    %v2851 = vrot.slane %v2838, 4
    %v2852 = vsel %vm206, %v2851, %v2832
    %v2853 = vrot.slane %v2832, 4
    %v2854 = vsel %vm206, %v2838, %v2853
    %v2856 = vunpack.c.l.s4 1934713408
    %v2857 = vunpack.c.0.s8 %v2856
    %v2858 = vperm.slane %v2852, %v2857
    %v2860 = vunpack.c.l.s4 1934713408
    %v2861 = vunpack.c.0.s8 %v2860
    %v2862 = vperm.slane %v2854, %v2861
    %v2863 = vrot.slane %v2858, 4
    %v2864 = vsel %vm206, %v2863, %v2846
    %v2865 = vrot.slane %v2846, 4
    %v2866 = vsel %vm206, %v2858, %v2865
    %v2867 = vrot.slane %v2862, 4
    %v2868 = vsel %vm206, %v2867, %v2850
    %v2869 = vrot.slane %v2850, 4
    %v2870 = vsel %vm206, %v2862, %v2869
    %v2871 = vrot.slane %v2804, 4
    %v2872 = vsel %vm206, %v2871, %v2800
    %v2874 = vunpack.c.l.s4 1983009808
    %v2875 = vunpack.c.0.s8 %v2874
    %v2876 = vperm.slane %v2872, %v2875
    %v2877 = vrot.slane %v2806, 4
    %v2878 = vsel %vm206, %v2877, %v2802
    %v2880 = vunpack.c.l.s4 1983009808
    %v2881 = vunpack.c.0.s8 %v2880
    %v2882 = vperm.slane %v2878, %v2881
    %v2883 = vrot.slane %v2812, 4
    %v2884 = vsel %vm206, %v2883, %v2808
    %v2886 = vunpack.c.l.s4 1983009808
    %v2887 = vunpack.c.0.s8 %v2886
    %v2888 = vperm.slane %v2884, %v2887
    %v2889 = vrot.slane %v2814, 4
    %v2890 = vsel %vm206, %v2889, %v2810
    %v2892 = vunpack.c.l.s4 1983009808
    %v2893 = vunpack.c.0.s8 %v2892
    %v2894 = vperm.slane %v2890, %v2893
    %v2895 = vrot.slane %v2882, 4
    %v2896 = vsel %vm206, %v2895, %v2876
    %v2897 = vrot.slane %v2876, 4
    %v2898 = vsel %vm206, %v2882, %v2897
    %v2900 = vunpack.c.l.s4 1934713408
    %v2901 = vunpack.c.0.s8 %v2900
    %v2902 = vperm.slane %v2896, %v2901
    %v2904 = vunpack.c.l.s4 1934713408
    %v2905 = vunpack.c.0.s8 %v2904
    %v2906 = vperm.slane %v2898, %v2905
    %v2907 = vrot.slane %v2894, 4
    %v2908 = vsel %vm206, %v2907, %v2888
    %v2909 = vrot.slane %v2888, 4
    %v2910 = vsel %vm206, %v2894, %v2909
    %v2912 = vunpack.c.l.s4 1934713408
    %v2913 = vunpack.c.0.s8 %v2912
    %v2914 = vperm.slane %v2908, %v2913
    %v2916 = vunpack.c.l.s4 1934713408
    %v2917 = vunpack.c.0.s8 %v2916
    %v2918 = vperm.slane %v2910, %v2917
    %v2919 = vrot.slane %v2914, 4
    %v2920 = vsel %vm206, %v2919, %v2902
    %v2921 = vrot.slane %v2902, 4
    %v2922 = vsel %vm206, %v2914, %v2921
    %v2923 = vrot.slane %v2918, 4
    %v2924 = vsel %vm206, %v2923, %v2906
    %v2925 = vrot.slane %v2906, 4
    %v2926 = vsel %vm206, %v2918, %v2925
    %v2928 = vsel %vm1102, %v2864, 0
    %v2931 = vsel %vm1102, %v2920, 0
    %v2934 = vsel %vm1102, %v2866, 0
    %v2937 = vsel %vm1102, %v2922, 0
    %v2940 = vsel %vm1102, %v2868, 0
    %v2943 = vsel %vm1102, %v2924, 0
    %v2946 = vsel %vm1102, %v2870, 0
    %v2949 = vsel %vm1102, %v2926, 0
    %v2952 = vsel %vm1102, %v2279, 0
    %v2955 = vsel %vm1102, %v2391, 0
    %v2958 = vsel %vm1102, %v2281, 0
    %v2961 = vsel %vm1102, %v2393, 0
    %v2964 = vsel %vm1102, %v2283, 0
    %v2967 = vsel %vm1102, %v2395, 0
    %v2970 = vsel %vm1102, %v2285, 0
    %v2973 = vsel %vm1102, %v2397, 0
    %v2976 = vsel %vm1102, %v2287, 0
    %v2979 = vsel %vm1102, %v2399, 0
    %v2982 = vsel %vm1102, %v2289, 0
    %v2985 = vsel %vm1102, %v2401, 0
    %v2988 = vsel %vm1102, %v2291, 0
    %v2991 = vsel %vm1102, %v2403, 0
    %v2994 = vsel %vm1102, %v2293, 0
    %v2997 = vsel %vm1102, %v2405, 0
    %2999 = vmatpush.xpose.msra.mxu0 %v2997
    %3000 = vmatpush.xpose.msra.mxu0 %v2994
    %3001 = vmatpush.xpose.msra.mxu0 %v2991
    %3002 = vmatpush.xpose.msra.mxu0 %v2988
    %3003 = vmatpush.xpose.msra.mxu0 %v2985
    %3004 = vmatpush.xpose.msra.mxu0 %v2982
    %3005 = vmatpush.xpose.msra.mxu0 %v2979
    %3006 = vmatpush.xpose.msra.mxu0 %v2976
    %3007 = vmatpush.xpose.msra.mxu0 %v2973
    %3008 = vmatpush.xpose.msra.mxu0 %v2970
    %3009 = vmatpush.xpose.msra.mxu0 %v2967
    %3010 = vmatpush.xpose.msra.mxu0 %v2964
    %3011 = vmatpush.xpose.msra.mxu0 %v2961
    %3012 = vmatpush.xpose.msra.mxu0 %v2958
    %3013 = vmatpush.xpose.msra.mxu0 %v2955
    %3014 = vmatpush.xpose.msra.mxu0 %v2952
    %3015 = vmatmul.f32.gmra.mxu0 %v2928
    %v3016 = vpop.f32.mrf.mxu0
    %v3017 = vadd.f32 %v75, %v3016
    %3018 = vmatmul.f32.gmra.mxu0 %v2931
    %v3019 = vpop.f32.mrf.mxu0
    %v3020 = vadd.f32 %v76, %v3019
    %3021 = vmatmul.f32.gmra.mxu0 %v2934
    %v3022 = vpop.f32.mrf.mxu0
    %v3023 = vadd.f32 %v77, %v3022
    %3024 = vmatmul.f32.gmra.mxu0 %v2937
    %v3025 = vpop.f32.mrf.mxu0
    %v3026 = vadd.f32 %v78, %v3025
    %3027 = vmatmul.f32.gmra.mxu0 %v2940
    %v3028 = vpop.f32.mrf.mxu0
    %v3029 = vadd.f32 %v79, %v3028
    %3030 = vmatmul.f32.gmra.mxu0 %v2943
    %v3031 = vpop.f32.mrf.mxu0
    %v3032 = vadd.f32 %v80, %v3031
    %3033 = vmatmul.f32.gmra.mxu0 %v2946
    %v3034 = vpop.f32.mrf.mxu0
    %v3035 = vadd.f32 %v81, %v3034
    %3036 = vmatmul.f32.gmra.mxu0 %v2949
    %v3037 = vpop.f32.mrf.mxu0
    %v3038 = vadd.f32 %v82, %v3037
    %3039 = vdwg.mxu0
    %3040 = vmax.xlane.f32.xlu0 %v3017
    %v3041 = vpop.xlane.xlu0 %3040
    %3042 = vmax.xlane.f32.xlu0 %v3020
    %v3043 = vpop.xlane.xlu0 %3042
    %3044 = vmax.xlane.f32.xlu0 %v3023
    %v3045 = vpop.xlane.xlu0 %3044
    %3046 = vmax.xlane.f32.xlu0 %v3026
    %v3047 = vpop.xlane.xlu0 %3046
    %3048 = vmax.xlane.f32.xlu0 %v3029
    %v3049 = vpop.xlane.xlu0 %3048
    %3050 = vmax.xlane.f32.xlu0 %v3032
    %v3051 = vpop.xlane.xlu0 %3050
    %3052 = vmax.xlane.f32.xlu0 %v3035
    %v3053 = vpop.xlane.xlu0 %3052
    %3054 = vmax.xlane.f32.xlu0 %v3038
    %v3055 = vpop.xlane.xlu0 %3054
    %v3056 = vsub.f32 %v3017, %v3041
    %v3057 = vsub.f32 %v3020, %v3043
    %v3058 = vsub.f32 %v3023, %v3045
    %v3059 = vsub.f32 %v3026, %v3047
    %v3060 = vsub.f32 %v3029, %v3049
    %v3061 = vsub.f32 %v3032, %v3051
    %v3062 = vsub.f32 %v3035, %v3053
    %v3063 = vsub.f32 %v3038, %v3055
    %v3064 = vmul.f32 %v3056, 1.442695
    %v3065 = vpow.pop %v3064
    %v3066 = vmul.f32 %v3057, 1.442695
    %v3067 = vpow.pop %v3066
    %v3068 = vmul.f32 %v3058, 1.442695
    %v3069 = vpow.pop %v3068
    %v3070 = vmul.f32 %v3059, 1.442695
    %v3071 = vpow.pop %v3070
    %v3072 = vmul.f32 %v3060, 1.442695
    %v3073 = vpow.pop %v3072
    %v3074 = vmul.f32 %v3061, 1.442695
    %v3075 = vpow.pop %v3074
    %v3076 = vmul.f32 %v3062, 1.442695
    %v3077 = vpow.pop %v3076
    %v3078 = vmul.f32 %v3063, 1.442695
    %v3079 = vpow.pop %v3078
    %3080 = vadd.xlane.f32.xlu0 %v3065
    %v3081 = vpop.xlane.xlu0 %3080
    %3082 = vadd.xlane.f32.xlu0 %v3067
    %v3083 = vpop.xlane.xlu0 %3082
    %3084 = vadd.xlane.f32.xlu0 %v3069
    %v3085 = vpop.xlane.xlu0 %3084
    %3086 = vadd.xlane.f32.xlu0 %v3071
    %v3087 = vpop.xlane.xlu0 %3086
    %3088 = vadd.xlane.f32.xlu0 %v3073
    %v3089 = vpop.xlane.xlu0 %3088
    %3090 = vadd.xlane.f32.xlu0 %v3075
    %v3091 = vpop.xlane.xlu0 %3090
    %3092 = vadd.xlane.f32.xlu0 %v3077
    %v3093 = vpop.xlane.xlu0 %3092
    %3094 = vadd.xlane.f32.xlu0 %v3079
    %v3095 = vpop.xlane.xlu0 %3094
    %v3096 = vrcp.pop %v3081
    %v3097 = vrcp.pop %v3083
    %v3098 = vrcp.pop %v3085
    %v3099 = vrcp.pop %v3087
    %v3100 = vrcp.pop %v3089
    %v3101 = vrcp.pop %v3091
    %v3102 = vrcp.pop %v3093
    %v3103 = vrcp.pop %v3095
    %v3104 = vmul.f32 %v3065, %v3096
    %v3105 = vmul.f32 %v3067, %v3097
    %v3106 = vmul.f32 %v3069, %v3098
    %v3107 = vmul.f32 %v3071, %v3099
    %v3108 = vmul.f32 %v3073, %v3100
    %v3109 = vmul.f32 %v3075, %v3101
    %v3110 = vmul.f32 %v3077, %v3102
    %v3111 = vmul.f32 %v3079, %v3103
    %3112 = vmatpush.msra.mxu0 %v2517
    %3113 = vmatpush.msra.mxu0 %v2461
    %3114 = vmatpush.msra.mxu0 %v2515
    %3115 = vmatpush.msra.mxu0 %v2459
    %3116 = vmatpush.msra.mxu0 %v2513
    %3117 = vmatpush.msra.mxu0 %v2457
    %3118 = vmatpush.msra.mxu0 %v2511
    %3119 = vmatpush.msra.mxu0 %v2455
    %3120 = vmatpush.msra.mxu0 %v2405
    %3121 = vmatpush.msra.mxu0 %v2293
    %3122 = vmatpush.msra.mxu0 %v2403
    %3123 = vmatpush.msra.mxu0 %v2291
    %3124 = vmatpush.msra.mxu0 %v2401
    %3125 = vmatpush.msra.mxu0 %v2289
    %3126 = vmatpush.msra.mxu0 %v2399
    %3127 = vmatpush.msra.mxu0 %v2287
    %3128 = vmatmul.f32.gmra.mxu0 %v3104
    %v3129 = vpop.f32.mrf.mxu0
    %v3130 = vadd.f32 0.0, %v3129
    %3131 = vmatmul.f32.gmra.mxu0 %v3105
    %v3132 = vpop.f32.mrf.mxu0
    %v3133 = vadd.f32 0.0, %v3132
    %3134 = vmatmul.f32.gmra.mxu0 %v3106
    %v3135 = vpop.f32.mrf.mxu0
    %v3136 = vadd.f32 0.0, %v3135
    %3137 = vmatmul.f32.gmra.mxu0 %v3107
    %v3138 = vpop.f32.mrf.mxu0
    %v3139 = vadd.f32 0.0, %v3138
    %3140 = vmatmul.f32.gmra.mxu0 %v3108
    %v3141 = vpop.f32.mrf.mxu0
    %v3142 = vadd.f32 0.0, %v3141
    %3143 = vmatmul.f32.gmra.mxu0 %v3109
    %v3144 = vpop.f32.mrf.mxu0
    %v3145 = vadd.f32 0.0, %v3144
    %3146 = vmatmul.f32.gmra.mxu0 %v3110
    %v3147 = vpop.f32.mrf.mxu0
    %v3148 = vadd.f32 0.0, %v3147
    %3149 = vmatmul.f32.gmra.mxu0 %v3111
    %v3150 = vpop.f32.mrf.mxu0
    %v3151 = vadd.f32 0.0, %v3150
    %3152 = vdwg.mxu0
    %v3153 = vrot.slane %v3142, 4
    %v3154 = vsel %vm206, %v3153, %v3130
    %v3155 = vrot.slane %v3130, 4
    %v3156 = vsel %vm206, %v3142, %v3155
    %v3158 = vunpack.c.l.s4 1983009808
    %v3159 = vunpack.c.0.s8 %v3158
    %v3160 = vperm.slane %v3154, %v3159
    %v3162 = vunpack.c.l.s4 1983009808
    %v3163 = vunpack.c.0.s8 %v3162
    %v3164 = vperm.slane %v3156, %v3163
    %v3165 = vrot.slane %v3148, 4
    %v3166 = vsel %vm206, %v3165, %v3136
    %v3167 = vrot.slane %v3136, 4
    %v3168 = vsel %vm206, %v3148, %v3167
    %v3170 = vunpack.c.l.s4 1983009808
    %v3171 = vunpack.c.0.s8 %v3170
    %v3172 = vperm.slane %v3166, %v3171
    %v3174 = vunpack.c.l.s4 1983009808
    %v3175 = vunpack.c.0.s8 %v3174
    %v3176 = vperm.slane %v3168, %v3175
    %v3177 = vrot.slane %v3172, 4
    %v3178 = vsel %vm206, %v3177, %v3160
    %v3179 = vrot.slane %v3160, 4
    %v3180 = vsel %vm206, %v3172, %v3179
    %v3182 = vunpack.c.l.s4 1934713408
    %v3183 = vunpack.c.0.s8 %v3182
    %v3184 = vperm.slane %v3178, %v3183
    %v3186 = vunpack.c.l.s4 1934713408
    %v3187 = vunpack.c.0.s8 %v3186
    %v3188 = vperm.slane %v3180, %v3187
    %v3189 = vrot.slane %v3176, 4
    %v3190 = vsel %vm206, %v3189, %v3164
    %v3191 = vrot.slane %v3164, 4
    %v3192 = vsel %vm206, %v3176, %v3191
    %v3194 = vunpack.c.l.s4 1934713408
    %v3195 = vunpack.c.0.s8 %v3194
    %v3196 = vperm.slane %v3190, %v3195
    %v3198 = vunpack.c.l.s4 1934713408
    %v3199 = vunpack.c.0.s8 %v3198
    %v3200 = vperm.slane %v3192, %v3199
    %v3201 = vrot.slane %v3184, 4
    %v3202 = vsel %vm206, 0.0, %v3201
    %v3203 = vrot.slane %v3188, 4
    %v3204 = vsel %vm206, 0.0, %v3203
    %v3205 = vrot.slane %v3196, 4
    %v3206 = vsel %vm206, 0.0, %v3205
    %v3207 = vrot.slane %v3200, 4
    %v3208 = vsel %vm206, 0.0, %v3207
    %v3209 = vrot.slane %v3145, 4
    %v3210 = vsel %vm206, %v3209, %v3133
    %v3211 = vrot.slane %v3133, 4
    %v3212 = vsel %vm206, %v3145, %v3211
    %v3214 = vunpack.c.l.s4 1983009808
    %v3215 = vunpack.c.0.s8 %v3214
    %v3216 = vperm.slane %v3210, %v3215
    %v3218 = vunpack.c.l.s4 1983009808
    %v3219 = vunpack.c.0.s8 %v3218
    %v3220 = vperm.slane %v3212, %v3219
    %v3221 = vrot.slane %v3151, 4
    %v3222 = vsel %vm206, %v3221, %v3139
    %v3223 = vrot.slane %v3139, 4
    %v3224 = vsel %vm206, %v3151, %v3223
    %v3226 = vunpack.c.l.s4 1983009808
    %v3227 = vunpack.c.0.s8 %v3226
    %v3228 = vperm.slane %v3222, %v3227
    %v3230 = vunpack.c.l.s4 1983009808
    %v3231 = vunpack.c.0.s8 %v3230
    %v3232 = vperm.slane %v3224, %v3231
    %v3233 = vrot.slane %v3228, 4
    %v3234 = vsel %vm206, %v3233, %v3216
    %v3235 = vrot.slane %v3216, 4
    %v3236 = vsel %vm206, %v3228, %v3235
    %v3238 = vunpack.c.l.s4 1934713408
    %v3239 = vunpack.c.0.s8 %v3238
    %v3240 = vperm.slane %v3234, %v3239
    %v3242 = vunpack.c.l.s4 1934713408
    %v3243 = vunpack.c.0.s8 %v3242
    %v3244 = vperm.slane %v3236, %v3243
    %v3245 = vrot.slane %v3232, 4
    %v3246 = vsel %vm206, %v3245, %v3220
    %v3247 = vrot.slane %v3220, 4
    %v3248 = vsel %vm206, %v3232, %v3247
    %v3250 = vunpack.c.l.s4 1934713408
    %v3251 = vunpack.c.0.s8 %v3250
    %v3252 = vperm.slane %v3246, %v3251
    %v3254 = vunpack.c.l.s4 1934713408
    %v3255 = vunpack.c.0.s8 %v3254
    %v3256 = vperm.slane %v3248, %v3255
    %v3257 = vrot.slane %v3240, 4
    %v3258 = vsel %vm206, 0.0, %v3257
    %v3259 = vrot.slane %v3244, 4
    %v3260 = vsel %vm206, 0.0, %v3259
    %v3261 = vrot.slane %v3252, 4
    %v3262 = vsel %vm206, 0.0, %v3261
    %v3263 = vrot.slane %v3256, 4
    %v3264 = vsel %vm206, 0.0, %v3263
    %v3265 = vsel %vm206, %v3203, %v3184
    %v3267 = vunpack.c.l.s4 1983009808
    %v3268 = vunpack.c.0.s8 %v3267
    %v3269 = vperm.slane %v3265, %v3268
    %v3270 = vrot.slane %v3204, 4
    %v3271 = vsel %vm206, %v3270, %v3202
    %v3273 = vunpack.c.l.s4 1983009808
    %v3274 = vunpack.c.0.s8 %v3273
    %v3275 = vperm.slane %v3271, %v3274
    %v3276 = vsel %vm206, %v3207, %v3196
    %v3278 = vunpack.c.l.s4 1983009808
    %v3279 = vunpack.c.0.s8 %v3278
    %v3280 = vperm.slane %v3276, %v3279
    %v3281 = vrot.slane %v3208, 4
    %v3282 = vsel %vm206, %v3281, %v3206
    %v3284 = vunpack.c.l.s4 1983009808
    %v3285 = vunpack.c.0.s8 %v3284
    %v3286 = vperm.slane %v3282, %v3285
    %v3287 = vrot.slane %v3275, 4
    %v3288 = vsel %vm206, %v3287, %v3269
    %v3289 = vrot.slane %v3269, 4
    %v3290 = vsel %vm206, %v3275, %v3289
    %v3292 = vunpack.c.l.s4 1934713408
    %v3293 = vunpack.c.0.s8 %v3292
    %v3294 = vperm.slane %v3288, %v3293
    %v3296 = vunpack.c.l.s4 1934713408
    %v3297 = vunpack.c.0.s8 %v3296
    %v3298 = vperm.slane %v3290, %v3297
    %v3299 = vrot.slane %v3286, 4
    %v3300 = vsel %vm206, %v3299, %v3280
    %v3301 = vrot.slane %v3280, 4
    %v3302 = vsel %vm206, %v3286, %v3301
    %v3304 = vunpack.c.l.s4 1934713408
    %v3305 = vunpack.c.0.s8 %v3304
    %v3306 = vperm.slane %v3300, %v3305
    %v3308 = vunpack.c.l.s4 1934713408
    %v3309 = vunpack.c.0.s8 %v3308
    %v3310 = vperm.slane %v3302, %v3309
    %v3311 = vrot.slane %v3306, 4
    %v3312 = vsel %vm206, %v3311, %v3294
    %v3313 = vrot.slane %v3294, 4
    %v3314 = vsel %vm206, %v3306, %v3313
    %v3315 = vrot.slane %v3310, 4
    %v3316 = vsel %vm206, %v3315, %v3298
    %v3317 = vrot.slane %v3298, 4
    %v3318 = vsel %vm206, %v3310, %v3317
    %v3319 = vsel %vm206, %v3259, %v3240
    %v3321 = vunpack.c.l.s4 1983009808
    %v3322 = vunpack.c.0.s8 %v3321
    %v3323 = vperm.slane %v3319, %v3322
    %v3324 = vrot.slane %v3260, 4
    %v3325 = vsel %vm206, %v3324, %v3258
    %v3327 = vunpack.c.l.s4 1983009808
    %v3328 = vunpack.c.0.s8 %v3327
    %v3329 = vperm.slane %v3325, %v3328
    %v3330 = vsel %vm206, %v3263, %v3252
    %v3332 = vunpack.c.l.s4 1983009808
    %v3333 = vunpack.c.0.s8 %v3332
    %v3334 = vperm.slane %v3330, %v3333
    %v3335 = vrot.slane %v3264, 4
    %v3336 = vsel %vm206, %v3335, %v3262
    %v3338 = vunpack.c.l.s4 1983009808
    %v3339 = vunpack.c.0.s8 %v3338
    %v3340 = vperm.slane %v3336, %v3339
    %v3341 = vrot.slane %v3329, 4
    %v3342 = vsel %vm206, %v3341, %v3323
    %v3343 = vrot.slane %v3323, 4
    %v3344 = vsel %vm206, %v3329, %v3343
    %v3346 = vunpack.c.l.s4 1934713408
    %v3347 = vunpack.c.0.s8 %v3346
    %v3348 = vperm.slane %v3342, %v3347
    %v3350 = vunpack.c.l.s4 1934713408
    %v3351 = vunpack.c.0.s8 %v3350
    %v3352 = vperm.slane %v3344, %v3351
    %v3353 = vrot.slane %v3340, 4
    %v3354 = vsel %vm206, %v3353, %v3334
    %v3355 = vrot.slane %v3334, 4
    %v3356 = vsel %vm206, %v3340, %v3355
    %v3358 = vunpack.c.l.s4 1934713408
    %v3359 = vunpack.c.0.s8 %v3358
    %v3360 = vperm.slane %v3354, %v3359
    %v3362 = vunpack.c.l.s4 1934713408
    %v3363 = vunpack.c.0.s8 %v3362
    %v3364 = vperm.slane %v3356, %v3363
    %v3365 = vrot.slane %v3360, 4
    %v3366 = vsel %vm206, %v3365, %v3348
    %v3367 = vrot.slane %v3348, 4
    %v3368 = vsel %vm206, %v3360, %v3367
    %v3369 = vrot.slane %v3364, 4
    %v3370 = vsel %vm206, %v3369, %v3352
    %v3371 = vrot.slane %v3352, 4
    %v3372 = vsel %vm206, %v3364, %v3371
    %3375 = vrot.lane.b32.xlu0 %v3314, 8
    %v3376 = vpop.permute.xlu0 %3375
    %3377 = vrot.lane.b32.xlu0 %v3368, 8
    %v3378 = vpop.permute.xlu0 %3377
    %3383 = vrot.lane.b32.xlu0 %v3316, 16
    %v3384 = vpop.permute.xlu0 %3383
    %3385 = vrot.lane.b32.xlu0 %v3370, 16
    %v3386 = vpop.permute.xlu0 %3385
    %3391 = vrot.lane.b32.xlu0 %v3318, 24
    %v3392 = vpop.permute.xlu0 %3391
    %3393 = vrot.lane.b32.xlu0 %v3372, 24
    %v3394 = vpop.permute.xlu0 %3393
    %v3397 = vsel %vm1102, %v3312, %v3376
    %v3398 = vsel %vm1102, %v3366, %v3378
    %v3399 = vsel %vm1575, %v3397, %v3384
    %v3400 = vsel %vm1575, %v3398, %v3386
    %v3401 = vsel %vm1578, %v3399, %v3392
    %v3402 = vsel %vm1578, %v3400, %v3394
    %v3403 = vperm.slane %v64, 0
    %v3405 = vsel %vm83, %v3401, 0
    %v3408 = vsel %vm83, %v3402, 0
    %3410 = vmatpush.msra.mxu0 0.0
    %3411 = vmatpush.msra.mxu0 0.0
    %3412 = vmatpush.msra.mxu0 0.0
    %3413 = vmatpush.msra.mxu0 0.0
    %3414 = vmatpush.msra.mxu0 0.0
    %3415 = vmatpush.msra.mxu0 0.0
    %3416 = vmatpush.msra.mxu0 0.0
    %3417 = vmatpush.msra.mxu0 0.0
    %3418 = vmatpush.msra.mxu0 0.0
    %3419 = vmatpush.msra.mxu0 0.0
    %3420 = vmatpush.msra.mxu0 0.0
    %3421 = vmatpush.msra.mxu0 0.0
    %3422 = vmatpush.msra.mxu0 %v50
    %3423 = vmatpush.msra.mxu0 %v49
    %3424 = vmatpush.msra.mxu0 %v48
    %3425 = vmatpush.msra.mxu0 %v47
    %3426 = vmatmul.f32.gmra.mxu0 %v3405
    %v3427 = vpop.f32.mrf.mxu0
    %v3428 = vadd.f32 %v3403, %v3427
    %3429 = vmatmul.f32.gmra.mxu0 %v3408
    %v3430 = vpop.f32.mrf.mxu0
    %v3431 = vadd.f32 %v3403, %v3430
    %3432 = vdwg.mxu0
    %v3433 = vadd.f32 %v3428, %v1611
    %v3434 = vadd.f32 %v3431, %v1612
    %v3435 = vperm.slane %v65, 0
    %v3437 = vsel %vm83, %v3433, 0
    %v3440 = vsel %vm83, %v3434, 0
    %3442 = vmatpush.msra.mxu0 0.0
    %3443 = vmatpush.msra.mxu0 0.0
    %3444 = vmatpush.msra.mxu0 0.0
    %3445 = vmatpush.msra.mxu0 0.0
    %3446 = vmatpush.msra.mxu0 0.0
    %3447 = vmatpush.msra.mxu0 0.0
    %3448 = vmatpush.msra.mxu0 0.0
    %3449 = vmatpush.msra.mxu0 0.0
    %3450 = vmatpush.msra.mxu0 0.0
    %3451 = vmatpush.msra.mxu0 0.0
    %3452 = vmatpush.msra.mxu0 0.0
    %3453 = vmatpush.msra.mxu0 0.0
    %3454 = vmatpush.msra.mxu0 %v54
    %3455 = vmatpush.msra.mxu0 %v53
    %3456 = vmatpush.msra.mxu0 %v52
    %3457 = vmatpush.msra.mxu0 %v51
    %3458 = vmatmul.f32.gmra.mxu0 %v3437
    %v3459 = vpop.f32.mrf.mxu0
    %v3460 = vadd.f32 %v3435, %v3459
    %3461 = vmatmul.f32.gmra.mxu0 %v3440
    %v3462 = vpop.f32.mrf.mxu0
    %v3463 = vadd.f32 %v3435, %v3462
    %3464 = vdwg.mxu0
    %v3465 = vmax.f32 %v3460, 0.0
    %v3466 = vmax.f32 %v3463, 0.0
    %v3467 = vperm.slane %v66, 0
    %vm3468 = vcmask 523264
    %v3470 = vsel %vm3468, %v3465, 0
    %v3473 = vsel %vm3468, %v3466, 0
    %3475 = vmatpush.msra.mxu0 0.0
    %3476 = vmatpush.msra.mxu0 0.0
    %3477 = vmatpush.msra.mxu0 0.0
    %3478 = vmatpush.msra.mxu0 0.0
    %3479 = vmatpush.msra.mxu0 0.0
    %3480 = vmatpush.msra.mxu0 0.0
    %3481 = vmatpush.msra.mxu0 0.0
    %3482 = vmatpush.msra.mxu0 0.0
    %3483 = vmatpush.msra.mxu0 %v62
    %3484 = vmatpush.msra.mxu0 %v61
    %3485 = vmatpush.msra.mxu0 %v60
    %3486 = vmatpush.msra.mxu0 %v59
    %3487 = vmatpush.msra.mxu0 %v58
    %3488 = vmatpush.msra.mxu0 %v57
    %3489 = vmatpush.msra.mxu0 %v56
    %3490 = vmatpush.msra.mxu0 %v55
    %3491 = vmatmul.f32.gmra.mxu0 %v3470
    %v3492 = vpop.f32.mrf.mxu0
    %v3493 = vadd.f32 %v3467, %v3492
    %3494 = vmatmul.f32.gmra.mxu0 %v3473
    %v3495 = vpop.f32.mrf.mxu0
    %v3496 = vadd.f32 %v3467, %v3495
    %3497 = vdwg.mxu0
    %v3498 = vadd.f32 %v3493, %v3433
    %v3499 = vadd.f32 %v3496, %v3434
    %3500 = vst.msk [vmem:[%s2] sm:$0xff] %vm83, %v3498
    %3501 = vst.msk [vmem:[%s2 + $0x8] sm:$0xff] %vm83, %v3499
    %3502 = vst.msk [vmem:[%s2 + $0x10] sm:$0xff] %vm83, %v29
    %3503 = vst.msk [vmem:[%s2 + $0x18] sm:$0xff] %vm83, %v30
    // Predicated region
    $region14: #{_decoder_layer_impl.1} parent=1 // pred_check
      _
    $region15: #{_decoder_layer_impl.1} parent=1 // pred_check_branch
      %3505 = sbr.rel (0) target = $region17
    $region16: #{_decoder_layer_impl.1} parent=1 // pred_region
      _
    $region17: #{_decoder_layer_impl.1} parent=1 // pred_fallthru
      _
    // Predicated region
    $region18: #{_decoder_layer_impl.1} parent=1 // pred_check
      _
    $region19: #{_decoder_layer_impl.1} parent=1 // pred_check_branch
      %3507 = sbr.rel (0) target = $region21
    $region20: #{_decoder_layer_impl.1} parent=1 // pred_region
      _
    $region21: #{_decoder_layer_impl.1} parent=1 // pred_fallthru
      _
    %3508 = vsyncpa [#allocation3], 1

</llo_original>
